<compile_context>
chip_gen: v7x
topology: tpu7x:2x2x1
jax: 0.10.0
libtpu: 0.0.40
codegen_flags: <defaults>
</compile_context>

<pallas_src>
import math

import jax
import jax.numpy as jnp
from jax.experimental import pallas as pl
from jax.experimental.pallas import tpu as pltpu


def _upsample_conv_kernel(xp_ref, w_ref, b_ref, o_ref):
    """One batch tile per grid step.

    xp_ref : (B_TILE, H+2, W+2, C)  zero-padded ORIGINAL-res images (bf16)
    w_ref  : (9*C, 4*C)             folded sub-pixel weights (bf16)
    b_ref  : (1, 4*C)               bias replicated over the 4 phases (f32)
    o_ref  : (B_TILE*H*W, 4*C)      output, 4 phases on the lane axis (bf16)
    """
    B, Hp, Wp, C = xp_ref.shape
    H, W = Hp - 2, Wp - 2

    # im2col fully in registers: 9 shifted (B, H, W, C) windows sliced straight
    # off the input ref, concatenated on the lane axis, collapsed to 2-D.
    taps = []
    for u in range(3):
        for v in range(3):
            taps.append(xp_ref[:, pl.ds(u, H), pl.ds(v, W), :])
    patch = jnp.concatenate(taps, axis=-1)            # (B, H, W, 9C) bf16
    patch = patch.reshape(B * H * W, 9 * C)           # (M, 9C)

    # Single fused MXU matmul: (M, 9C) x (9C, 4C) -> (M, 4C), f32 accumulation.
    acc = jnp.dot(patch, w_ref[...], preferred_element_type=jnp.float32)
    acc = acc + b_ref[...]                             # bias added once

    # Lane-dense store: last dim is 4*C (= 128 for C = 32).
    o_ref[...] = acc.astype(o_ref.dtype)


def _fold_weights(weight_oihw):
    """Fold nearest-2x upsample + 3x3 conv into one (9*C_in, 4*C_out) matrix.

    Output pixel (2i+a, 2j+b) of the conv over the nearest-upsampled image is a
    linear map of the 3x3 window of the ORIGINAL zero-padded image starting at
    padded coordinate (i, j). fold[a, u, kh] = 1 iff original filter row kh
    contributes to window row u for vertical phase a (same matrix for columns).
    """
    c_out, c_in, _, _ = weight_oihw.shape
    w = weight_oihw.astype(jnp.float32)
    fold = jnp.array(
        [[[1., 0., 0.],
          [0., 1., 1.],
          [0., 0., 0.]],
         [[0., 0., 0.],
          [1., 1., 0.],
          [0., 0., 1.]]], dtype=jnp.float32)           # fold[a, u, kh]
    # wbig[u, v, ci, a, b, co] = sum_{kh,kw} fold[a,u,kh] fold[b,v,kw] w[co,ci,kh,kw]
    wbig = jnp.einsum('auh,bvw,oihw->uviabo', fold, fold, w)
    return wbig.reshape(9 * c_in, 4 * c_out)


@jax.jit
def upsample_forward(x_nchw, weight_oihw, bias):
    """Upsample.forward: nearest 2x upsample, then Conv2d(C, C, 3, padding=1)."""
    x = x_nchw.astype(jnp.float32)
    N, C, H, W = x.shape
    assert (4 * C) % 128 == 0, "need C multiple of 32 for lane-dense output"
    assert (H * W) % 8 == 0

    # Input-side XLA glue (one fused pass): NCHW -> NHWC, cast to bf16, 1-pixel
    # zero pad of the ORIGINAL image. The 2x-upsampled tensor never exists.
    x_nhwc = jnp.transpose(x, (0, 2, 3, 1)).astype(jnp.bfloat16)   # (N, H, W, C)
    xp = jnp.pad(x_nhwc, ((0, 0), (1, 1), (1, 1), (0, 0)))         # (N, H+2, W+2, C)

    w_folded = _fold_weights(weight_oihw).astype(jnp.bfloat16)     # (9C, 4C)
    b4 = jnp.tile(bias.astype(jnp.float32), 4).reshape(1, 4 * C)   # (1, 4C)

    # Fold batch into the matmul M dimension: B_TILE images per grid step so
    # M = B_TILE*H*W is reasonably large (targets >= ~256 when batch allows).
    b_tile = max(1, min(N, max(1, 256 // (H * W))))
    while N % b_tile:
        b_tile -= 1
    grid = (N // b_tile,)
    m = b_tile * H * W

    cost = pl.CostEstimate(
        flops=2 * N * H * W * (9 * C) * (4 * C),
        transcendentals=0,
        bytes_accessed=(xp.size * 2 + w_folded.size * 2 + b4.size * 4
                        + N * H * W * 4 * C * 2))

    out = pl.pallas_call(
        _upsample_conv_kernel,
        out_shape=jax.ShapeDtypeStruct((N * H * W, 4 * C), jnp.bfloat16),
        grid=grid,
        in_specs=[
            pl.BlockSpec((b_tile, H + 2, W + 2, C), lambda n: (n, 0, 0, 0)),
            pl.BlockSpec((9 * C, 4 * C), lambda n: (0, 0)),
            pl.BlockSpec((1, 4 * C), lambda n: (0, 0)),
        ],
        out_specs=pl.BlockSpec((m, 4 * C), lambda n: (n, 0)),
        compiler_params=pltpu.CompilerParams(
            dimension_semantics=("parallel",),
            vmem_limit_bytes=32 * 1024 * 1024),
        cost_estimate=cost,
    )(xp, w_folded, b4)

    # Pixel-shuffle the four phases and return NCHW f32 (one fused XLA
    # transpose+cast pass; required by the module's NCHW / f32 interface).
    out = out.astype(jnp.float32).reshape(N, H, W, 2, 2, C)   # (n, i, j, a, b, c)
    out = jnp.transpose(out, (0, 5, 1, 3, 2, 4))              # (n, c, i, a, j, b)
    return out.reshape(N, C, 2 * H, 2 * W)


def _reference(x_nchw, weight_oihw, bias):
    x = x_nchw.astype(jnp.float32)
    up = jnp.repeat(jnp.repeat(x, 2, axis=2), 2, axis=3)
    y = jax.lax.conv_general_dilated(
        up, weight_oihw.astype(jnp.float32), window_strides=(1, 1),
        padding="SAME", dimension_numbers=("NCHW", "OIHW", "NCHW"))
    return y + bias.astype(jnp.float32)[None, :, None, None]


if __name__ == "__main__":
    log2_dim = 5
    n = 2 ** log2_dim            # channels (n = 32 -> 4*C = 128 output lanes)
    batch, H, W = 2, 8, 8

    key = jax.random.PRNGKey(0)
    kx, kw, kb = jax.random.split(key, 3)

    # Deterministic Conv2d(n, n, 3) params (PyTorch-style uniform init bounds).
    fan_in = n * 3 * 3
    bound = 1.0 / math.sqrt(fan_in)
    weight = jax.random.uniform(kw, (n, n, 3, 3), jnp.float32, -bound, bound)  # OIHW
    bias = jax.random.uniform(kb, (n,), jnp.float32, -bound, bound)

    x = jax.random.normal(kx, (batch, n, H, W), jnp.float32)                   # NCHW

    out = jax.block_until_ready(upsample_forward(x, weight, bias))
    ref = jax.block_until_ready(_reference(x, weight, bias))

    assert out.shape == (batch, n, 2 * H, 2 * W)
    # bf16 MXU operands / bf16 output store (f32 accumulation) -> relaxed
    # tolerance vs the pure-f32 reference.
    max_err = float(jnp.max(jnp.abs(out - ref)))
    assert jnp.allclose(out, ref, atol=3e-2, rtol=3e-2), max_err

    print("KERNEL_OK")
</pallas_src>

<mosaic_0001>
module attributes {stable_mosaic.version = 11 : i64} {
  func.func @_upsample_conv_kernel(%arg0: i32, %arg1: memref<2x10x10x32xbf16, #tpu.memory_space<vmem>>, %arg2: memref<288x128xbf16, #tpu.memory_space<vmem>>, %arg3: memref<1x128xf32, #tpu.memory_space<vmem>>, %arg4: memref<128x128xbf16, #tpu.memory_space<vmem>>) attributes {dimension_semantics = [#tpu.dimension_semantics<parallel>], iteration_bounds = array<i64: 1>, scalar_prefetch = 0 : i64, scratch_operands = 0 : i64, tpu.core_type = #tpu.core_type<tc>, window_params = [{transform_indices = @transform_0, window_bounds = array<i64: 2, 10, 10, 32>}, {pipeline_mode = #tpu.pipeline_mode<synchronous>, transform_indices = @transform_1, window_bounds = array<i64: 288, 128>}, {pipeline_mode = #tpu.pipeline_mode<synchronous>, transform_indices = @transform_2, window_bounds = array<i64: 1, 128>}, {transform_indices = @transform_3, window_bounds = array<i64: 128, 128>}]} {
    %c0 = arith.constant 0 : index
    %c0_0 = arith.constant 0 : index
    %c0_1 = arith.constant 0 : index
    %c0_2 = arith.constant 0 : index
    %0 = vector.load %arg1[%c0, %c0_0, %c0_1, %c0_2] : memref<2x10x10x32xbf16, #tpu.memory_space<vmem>>, vector<2x8x8x32xbf16>
    %c0_3 = arith.constant 0 : index
    %c0_4 = arith.constant 0 : index
    %c1 = arith.constant 1 : index
    %c0_5 = arith.constant 0 : index
    %1 = vector.load %arg1[%c0_3, %c0_4, %c1, %c0_5] : memref<2x10x10x32xbf16, #tpu.memory_space<vmem>>, vector<2x8x8x32xbf16>
    %c0_6 = arith.constant 0 : index
    %c0_7 = arith.constant 0 : index
    %c2 = arith.constant 2 : index
    %c0_8 = arith.constant 0 : index
    %2 = vector.load %arg1[%c0_6, %c0_7, %c2, %c0_8] : memref<2x10x10x32xbf16, #tpu.memory_space<vmem>>, vector<2x8x8x32xbf16>
    %c0_9 = arith.constant 0 : index
    %c1_10 = arith.constant 1 : index
    %c0_11 = arith.constant 0 : index
    %c0_12 = arith.constant 0 : index
    %3 = vector.load %arg1[%c0_9, %c1_10, %c0_11, %c0_12] : memref<2x10x10x32xbf16, #tpu.memory_space<vmem>>, vector<2x8x8x32xbf16>
    %c0_13 = arith.constant 0 : index
    %c1_14 = arith.constant 1 : index
    %c1_15 = arith.constant 1 : index
    %c0_16 = arith.constant 0 : index
    %4 = vector.load %arg1[%c0_13, %c1_14, %c1_15, %c0_16] : memref<2x10x10x32xbf16, #tpu.memory_space<vmem>>, vector<2x8x8x32xbf16>
    %c0_17 = arith.constant 0 : index
    %c1_18 = arith.constant 1 : index
    %c2_19 = arith.constant 2 : index
    %c0_20 = arith.constant 0 : index
    %5 = vector.load %arg1[%c0_17, %c1_18, %c2_19, %c0_20] : memref<2x10x10x32xbf16, #tpu.memory_space<vmem>>, vector<2x8x8x32xbf16>
    %c0_21 = arith.constant 0 : index
    %c2_22 = arith.constant 2 : index
    %c0_23 = arith.constant 0 : index
    %c0_24 = arith.constant 0 : index
    %6 = vector.load %arg1[%c0_21, %c2_22, %c0_23, %c0_24] : memref<2x10x10x32xbf16, #tpu.memory_space<vmem>>, vector<2x8x8x32xbf16>
    %c0_25 = arith.constant 0 : index
    %c2_26 = arith.constant 2 : index
    %c1_27 = arith.constant 1 : index
    %c0_28 = arith.constant 0 : index
    %7 = vector.load %arg1[%c0_25, %c2_26, %c1_27, %c0_28] : memref<2x10x10x32xbf16, #tpu.memory_space<vmem>>, vector<2x8x8x32xbf16>
    %c0_29 = arith.constant 0 : index
    %c2_30 = arith.constant 2 : index
    %c2_31 = arith.constant 2 : index
    %c0_32 = arith.constant 0 : index
    %8 = vector.load %arg1[%c0_29, %c2_30, %c2_31, %c0_32] : memref<2x10x10x32xbf16, #tpu.memory_space<vmem>>, vector<2x8x8x32xbf16>
    %9 = tpu.concatenate %0, %1, %2, %3, %4, %5, %6, %7, %8 in 3 : vector<2x8x8x32xbf16>, vector<2x8x8x32xbf16>, vector<2x8x8x32xbf16>, vector<2x8x8x32xbf16>, vector<2x8x8x32xbf16>, vector<2x8x8x32xbf16>, vector<2x8x8x32xbf16>, vector<2x8x8x32xbf16>, vector<2x8x8x32xbf16> -> vector<2x8x8x288xbf16>
    %10 = vector.shape_cast %9 : vector<2x8x8x288xbf16> to vector<128x288xbf16>
    %c0_33 = arith.constant 0 : index
    %c0_34 = arith.constant 0 : index
    %11 = vector.load %arg2[%c0_33, %c0_34] : memref<288x128xbf16, #tpu.memory_space<vmem>>, vector<288x128xbf16>
    %cst = arith.constant dense<0.000000e+00> : vector<128x128xf32>
    %12 = tpu.matmul %10, %11, %cst {dimension_numbers = #tpu.dot_dimension_numbers<[1], [0], [0], [1], [0, 0, 1, 1], [], []>} : vector<128x288xbf16>, vector<288x128xbf16>, vector<128x128xf32> -> vector<128x128xf32>
    %c0_35 = arith.constant 0 : index
    %c0_36 = arith.constant 0 : index
    %13 = vector.load %arg3[%c0_35, %c0_36] : memref<1x128xf32, #tpu.memory_space<vmem>>, vector<1x128xf32>
    %14 = vector.broadcast %13 : vector<1x128xf32> to vector<128x128xf32>
    %15 = arith.addf %12, %14 : vector<128x128xf32>
    %16 = arith.truncf %15 : vector<128x128xf32> to vector<128x128xbf16>
    %c0_37 = arith.constant 0 : index
    %c0_38 = arith.constant 0 : index
    %17 = vector.load %arg4[%c0_37, %c0_38] : memref<128x128xbf16, #tpu.memory_space<vmem>>, vector<128x128xbf16>
    tpu.vector_store %arg4[%c0_37, %c0_38], %16 {strides = array<i32>} : memref<128x128xbf16, #tpu.memory_space<vmem>>, vector<128x128xbf16>,
    return
  }
  func.func @transform_0(%arg0: i32) -> (i32, i32, i32, i32) {
    %c0_i32 = arith.constant 0 : i32
    %c0_i32_0 = arith.constant 0 : i32
    %c0_i32_1 = arith.constant 0 : i32
    %c0_i32_2 = arith.constant 0 : i32
    return %arg0, %c0_i32, %c0_i32_0, %c0_i32_1 : i32, i32, i32, i32
  }
  func.func @transform_1(%arg0: i32) -> (i32, i32) {
    %c0_i32 = arith.constant 0 : i32
    %c0_i32_0 = arith.constant 0 : i32
    %c0_i32_1 = arith.constant 0 : i32
    return %c0_i32, %c0_i32_0 : i32, i32
  }
  func.func @transform_2(%arg0: i32) -> (i32, i32) {
    %c0_i32 = arith.constant 0 : i32
    %c0_i32_0 = arith.constant 0 : i32
    %c0_i32_1 = arith.constant 0 : i32
    return %c0_i32, %c0_i32_0 : i32, i32
  }
  func.func @transform_3(%arg0: i32) -> (i32, i32) {
    %c0_i32 = arith.constant 0 : i32
    %c0_i32_0 = arith.constant 0 : i32
    return %arg0, %c0_i32 : i32, i32
  }
}

</mosaic_0001>

<llo_original>
// kernel: tile.8
$region0: #{tile.8}
  #allocation0 [shape = 's32[1]{0}', space=sflag, size = 0x4, scoped, tag = 'scoped memory for tile.8']
  %s0 = inlined_call_operand.vmem [shape: f32[32], index: 0, kind: input, shape index: {}]
  %s1 = inlined_call_operand.vmem [shape: f32[4,32], index: 1, kind: output, shape index: {}]
  // Predicated region
  $region2: #{tile.8} parent=0 // pred_check
    _
  $region3: #{tile.8} parent=0 // pred_check_branch
    %3 = sbr.rel (0) target = $region5
  $region4: #{tile.8} parent=0 // pred_region
    _
  $region5: #{tile.8} parent=0 // pred_fallthru
    _
  %v4 = vld [vmem:[%s0] ss:$0 sm:$0xff]
  %5 = vst [vmem:[%s1] sm:$0xf] %v4

// kernel: tile.9
$region0: #{tile.9}
  %s0 = inlined_call_operand.vmem [shape: f32[4,32], index: 0, kind: input, shape index: {}]
  %s1 = inlined_call_operand.vmem [shape: f32[1,128], index: 1, kind: output, shape index: {}]
  $region1: #{tile.9} parent=0
    #allocation0 [shape = 'u8[4096]{0}', space=vmem, size = 0x1000, scoped, tag = 'scoped mem for output reshape']
    #allocation1 [shape = 'u8[4096]{0}', space=vmem, size = 0x1000, scoped, tag = 'scoped mem for input reshape']
    %s3 = sshllo.u32 0, 4
    %v4 = vld [vmem:[%s0] sm:%s3]
    %5 = vst [vmem:[#allocation1] sm:%s3] %v4
    %v6 = vld [vmem:[#allocation1] sm:$0x1]
    %vm7 = vcmask 261120
    %8 = vst.msk [vmem:[#allocation0] sm:$0x1] %vm7, %v6
    %s9 = scalar_lea.vmem [#allocation1], 3
    %v10 = vld [vmem:[%s9] sm:$0x1]
    %11 = vrot.lane.b32.xlu0 %v10, 96
    %v12 = vpop.permute.xlu0 %11
    %vm13 = vcmask 1048320
    %14 = vst.msk [vmem:[#allocation0] sm:$0x1] %vm13, %v12
    %s15 = scalar_lea.vmem [#allocation1], 2
    %v16 = vld [vmem:[%s15] sm:$0x1]
    %17 = vrot.lane.b32.xlu0 %v16, 64
    %v18 = vpop.permute.xlu0 %17
    %vm19 = vcmask 785920
    %20 = vst.msk [vmem:[#allocation0] sm:$0x1] %vm19, %v18
    %s21 = scalar_lea.vmem [#allocation1], 1
    %v22 = vld [vmem:[%s21] sm:$0x1]
    %23 = vrot.lane.b32.xlu0 %v22, 32
    %v24 = vpop.permute.xlu0 %23
    %vm25 = vcmask 523520
    %26 = vst.msk [vmem:[#allocation0] sm:$0x1] %vm25, %v24
    %s28 = sshllo.u32 0, 1
    %v30 = vld [vmem:[#allocation0] sm:%s28]
    %s31 = sshllo.u32 0, 1
    %32 = vst [vmem:[%s1] sm:%s31] %v30

// kernel: upsample_forward.1
$region0: #{upsample_forward.1}
  #allocation0 [shape = 'u32[]', space=smem, size = 0x4, offset = 0x4, fixed_abs, tag = 'smem constant byte address 0x4 - core index']
  #allocation1 [shape = 'u32[144,128]{1,0:T(1,128)}', space=vmem, size = 0x12000, scoped, tag = 'internal scratch']
  %s0 = inlined_call_operand.vmem [shape: bf16[2,10,10,32], index: 0, kind: input, shape index: {}]
  %s1 = inlined_call_operand.vmem [shape: bf16[288,128], index: 1, kind: input, shape index: {}]
  %s2 = inlined_call_operand.vmem [shape: f32[1,128], index: 2, kind: input, shape index: {}]
  %s3 = inlined_call_operand.vmem [shape: bf16[128,128], index: 3, kind: output, shape index: {}]
  %s4 = sld [smem:[#allocation0]]
  $region22: #{upsample_forward.1} parent=0
    _
  %s6 = ssub.s32 1, %s4
  %s7 = scalar_select 0, %s6, %s4
  // Predicated region
  $region2: #{upsample_forward.1} parent=0 // pred_check
    _
  $region3: #{upsample_forward.1} parent=0 // pred_check_branch
    %9 = sbr.rel (0) target = $region5
  $region4: #{upsample_forward.1} parent=0 // pred_region
    _
  $region5: #{upsample_forward.1} parent=0 // pred_fallthru
    _
  // Predicated region
  $region6: #{upsample_forward.1} parent=0 // pred_check
    _
  $region7: #{upsample_forward.1} parent=0 // pred_check_branch
    %11 = sbr.rel (0) target = $region9
  $region8: #{upsample_forward.1} parent=0 // pred_region
    _
  $region9: #{upsample_forward.1} parent=0 // pred_fallthru
    _
  // Predicated region
  $region10: #{upsample_forward.1} parent=0 // pred_check
    _
  $region11: #{upsample_forward.1} parent=0 // pred_check_branch
    %13 = sbr.rel (0) target = $region13
  $region12: #{upsample_forward.1} parent=0 // pred_region
    _
  $region13: #{upsample_forward.1} parent=0 // pred_fallthru
    _
  %v15 = vld [vmem:[%s0] sm:$0xf]
  %v16 = vld [vmem:[%s0 + $0x8] sm:$0xf]
  %v17 = vld [vmem:[%s0 + $0x10] sm:$0xf]
  %v18 = vld [vmem:[%s0 + $0x18] sm:$0xf]
  %v19 = vld [vmem:[%s0 + $0x20] sm:$0xf]
  %v20 = vld [vmem:[%s0 + $0x28] sm:$0xf]
  %v21 = vld [vmem:[%s0 + $0x30] sm:$0xf]
  %v22 = vld [vmem:[%s0 + $0x38] sm:$0xf]
  %v23 = vld [vmem:[%s0 + $0x50] sm:$0xf]
  %v24 = vld [vmem:[%s0 + $0x58] sm:$0xf]
  %v25 = vld [vmem:[%s0 + $0x60] sm:$0xf]
  %v26 = vld [vmem:[%s0 + $0x68] sm:$0xf]
  %v27 = vld [vmem:[%s0 + $0x70] sm:$0xf]
  %v28 = vld [vmem:[%s0 + $0x78] sm:$0xf]
  %v29 = vld [vmem:[%s0 + $0x80] sm:$0xf]
  %v30 = vld [vmem:[%s0 + $0x88] sm:$0xf]
  %v31 = vld [vmem:[%s0 + $0x4] sm:$0x1]
  %v32 = vld [vmem:[%s0 + $0xc] sm:$0x1]
  %v33 = vld [vmem:[%s0 + $0x14] sm:$0x1]
  %v34 = vld [vmem:[%s0 + $0x1c] sm:$0x1]
  %v35 = vld [vmem:[%s0 + $0x24] sm:$0x1]
  %v36 = vld [vmem:[%s0 + $0x2c] sm:$0x1]
  %v37 = vld [vmem:[%s0 + $0x34] sm:$0x1]
  %v38 = vld [vmem:[%s0 + $0x3c] sm:$0x1]
  %v39 = vld [vmem:[%s0 + $0x54] sm:$0x1]
  %v40 = vld [vmem:[%s0 + $0x5c] sm:$0x1]
  %v41 = vld [vmem:[%s0 + $0x64] sm:$0x1]
  %v42 = vld [vmem:[%s0 + $0x6c] sm:$0x1]
  %v43 = vld [vmem:[%s0 + $0x74] sm:$0x1]
  %v44 = vld [vmem:[%s0 + $0x7c] sm:$0x1]
  %v45 = vld [vmem:[%s0 + $0x84] sm:$0x1]
  %v46 = vld [vmem:[%s0 + $0x8c] sm:$0x1]
  %v47 = vld [vmem:[%s0] sm:$0xe]
  %v48 = vld [vmem:[%s0 + $0x8] sm:$0xe]
  %v49 = vld [vmem:[%s0 + $0x10] sm:$0xe]
  %v50 = vld [vmem:[%s0 + $0x18] sm:$0xe]
  %v51 = vld [vmem:[%s0 + $0x20] sm:$0xe]
  %v52 = vld [vmem:[%s0 + $0x28] sm:$0xe]
  %v53 = vld [vmem:[%s0 + $0x30] sm:$0xe]
  %v54 = vld [vmem:[%s0 + $0x38] sm:$0xe]
  %v55 = vld [vmem:[%s0 + $0x50] sm:$0xe]
  %v56 = vld [vmem:[%s0 + $0x58] sm:$0xe]
  %v57 = vld [vmem:[%s0 + $0x60] sm:$0xe]
  %v58 = vld [vmem:[%s0 + $0x68] sm:$0xe]
  %v59 = vld [vmem:[%s0 + $0x70] sm:$0xe]
  %v60 = vld [vmem:[%s0 + $0x78] sm:$0xe]
  %v61 = vld [vmem:[%s0 + $0x80] sm:$0xe]
  %v62 = vld [vmem:[%s0 + $0x88] sm:$0xe]
  %s63 = scalar_lea.vmem %s0, 8
  %v64 = vld [vmem:[%s63] sm:$0xf]
  %v65 = vld [vmem:[%s63 + $0x8] sm:$0xf]
  %v66 = vld [vmem:[%s63 + $0x10] sm:$0xf]
  %v67 = vld [vmem:[%s63 + $0x18] sm:$0xf]
  %v68 = vld [vmem:[%s63 + $0x20] sm:$0xf]
  %v69 = vld [vmem:[%s63 + $0x28] sm:$0xf]
  %v70 = vld [vmem:[%s63 + $0x30] sm:$0xf]
  %v71 = vld [vmem:[%s63 + $0x38] sm:$0xf]
  %v72 = vld [vmem:[%s63 + $0x50] sm:$0xf]
  %v73 = vld [vmem:[%s63 + $0x58] sm:$0xf]
  %v74 = vld [vmem:[%s63 + $0x60] sm:$0xf]
  %v75 = vld [vmem:[%s63 + $0x68] sm:$0xf]
  %v76 = vld [vmem:[%s63 + $0x70] sm:$0xf]
  %v77 = vld [vmem:[%s63 + $0x78] sm:$0xf]
  %v78 = vld [vmem:[%s63 + $0x80] sm:$0xf]
  %v79 = vld [vmem:[%s63 + $0x88] sm:$0xf]
  %v80 = vld [vmem:[%s63 + $0x4] sm:$0x1]
  %v81 = vld [vmem:[%s63 + $0xc] sm:$0x1]
  %v82 = vld [vmem:[%s63 + $0x14] sm:$0x1]
  %v83 = vld [vmem:[%s63 + $0x1c] sm:$0x1]
  %v84 = vld [vmem:[%s63 + $0x24] sm:$0x1]
  %v85 = vld [vmem:[%s63 + $0x2c] sm:$0x1]
  %v86 = vld [vmem:[%s63 + $0x34] sm:$0x1]
  %v87 = vld [vmem:[%s63 + $0x3c] sm:$0x1]
  %v88 = vld [vmem:[%s63 + $0x54] sm:$0x1]
  %v89 = vld [vmem:[%s63 + $0x5c] sm:$0x1]
  %v90 = vld [vmem:[%s63 + $0x64] sm:$0x1]
  %v91 = vld [vmem:[%s63 + $0x6c] sm:$0x1]
  %v92 = vld [vmem:[%s63 + $0x74] sm:$0x1]
  %v93 = vld [vmem:[%s63 + $0x7c] sm:$0x1]
  %v94 = vld [vmem:[%s63 + $0x84] sm:$0x1]
  %v95 = vld [vmem:[%s63 + $0x8c] sm:$0x1]
  %v96 = vld [vmem:[%s63] sm:$0xe]
  %v97 = vld [vmem:[%s63 + $0x8] sm:$0xe]
  %v98 = vld [vmem:[%s63 + $0x10] sm:$0xe]
  %v99 = vld [vmem:[%s63 + $0x18] sm:$0xe]
  %v100 = vld [vmem:[%s63 + $0x20] sm:$0xe]
  %v101 = vld [vmem:[%s63 + $0x28] sm:$0xe]
  %v102 = vld [vmem:[%s63 + $0x30] sm:$0xe]
  %v103 = vld [vmem:[%s63 + $0x38] sm:$0xe]
  %v104 = vld [vmem:[%s63 + $0x50] sm:$0xe]
  %v105 = vld [vmem:[%s63 + $0x58] sm:$0xe]
  %v106 = vld [vmem:[%s63 + $0x60] sm:$0xe]
  %v107 = vld [vmem:[%s63 + $0x68] sm:$0xe]
  %v108 = vld [vmem:[%s63 + $0x70] sm:$0xe]
  %v109 = vld [vmem:[%s63 + $0x78] sm:$0xe]
  %v110 = vld [vmem:[%s63 + $0x80] sm:$0xe]
  %v111 = vld [vmem:[%s63 + $0x88] sm:$0xe]
  %s112 = scalar_lea.vmem %s0, 16
  %v113 = vld [vmem:[%s112] sm:$0xf]
  %v114 = vld [vmem:[%s112 + $0x8] sm:$0xf]
  %v115 = vld [vmem:[%s112 + $0x10] sm:$0xf]
  %v116 = vld [vmem:[%s112 + $0x18] sm:$0xf]
  %v117 = vld [vmem:[%s112 + $0x20] sm:$0xf]
  %v118 = vld [vmem:[%s112 + $0x28] sm:$0xf]
  %v119 = vld [vmem:[%s112 + $0x30] sm:$0xf]
  %v120 = vld [vmem:[%s112 + $0x38] sm:$0xf]
  %v121 = vld [vmem:[%s112 + $0x50] sm:$0xf]
  %v122 = vld [vmem:[%s112 + $0x58] sm:$0xf]
  %v123 = vld [vmem:[%s112 + $0x60] sm:$0xf]
  %v124 = vld [vmem:[%s112 + $0x68] sm:$0xf]
  %v125 = vld [vmem:[%s112 + $0x70] sm:$0xf]
  %v126 = vld [vmem:[%s112 + $0x78] sm:$0xf]
  %v127 = vld [vmem:[%s112 + $0x80] sm:$0xf]
  %v128 = vld [vmem:[%s112 + $0x88] sm:$0xf]
  %v129 = vld [vmem:[%s112 + $0x4] sm:$0x1]
  %v130 = vld [vmem:[%s112 + $0xc] sm:$0x1]
  %v131 = vld [vmem:[%s112 + $0x14] sm:$0x1]
  %v132 = vld [vmem:[%s112 + $0x1c] sm:$0x1]
  %v133 = vld [vmem:[%s112 + $0x24] sm:$0x1]
  %v134 = vld [vmem:[%s112 + $0x2c] sm:$0x1]
  %v135 = vld [vmem:[%s112 + $0x34] sm:$0x1]
  %v136 = vld [vmem:[%s112 + $0x3c] sm:$0x1]
  %v137 = vld [vmem:[%s112 + $0x54] sm:$0x1]
  %v138 = vld [vmem:[%s112 + $0x5c] sm:$0x1]
  %v139 = vld [vmem:[%s112 + $0x64] sm:$0x1]
  %v140 = vld [vmem:[%s112 + $0x6c] sm:$0x1]
  %v141 = vld [vmem:[%s112 + $0x74] sm:$0x1]
  %v142 = vld [vmem:[%s112 + $0x7c] sm:$0x1]
  %v143 = vld [vmem:[%s112 + $0x84] sm:$0x1]
  %v144 = vld [vmem:[%s112 + $0x8c] sm:$0x1]
  %v145 = vld [vmem:[%s112] sm:$0xe]
  %v146 = vld [vmem:[%s112 + $0x8] sm:$0xe]
  %v147 = vld [vmem:[%s112 + $0x10] sm:$0xe]
  %v148 = vld [vmem:[%s112 + $0x18] sm:$0xe]
  %v149 = vld [vmem:[%s112 + $0x20] sm:$0xe]
  %v150 = vld [vmem:[%s112 + $0x28] sm:$0xe]
  %v151 = vld [vmem:[%s112 + $0x30] sm:$0xe]
  %v152 = vld [vmem:[%s112 + $0x38] sm:$0xe]
  %v153 = vld [vmem:[%s112 + $0x50] sm:$0xe]
  %v154 = vld [vmem:[%s112 + $0x58] sm:$0xe]
  %v155 = vld [vmem:[%s112 + $0x60] sm:$0xe]
  %v156 = vld [vmem:[%s112 + $0x68] sm:$0xe]
  %v157 = vld [vmem:[%s112 + $0x70] sm:$0xe]
  %v158 = vld [vmem:[%s112 + $0x78] sm:$0xe]
  %v159 = vld [vmem:[%s112 + $0x80] sm:$0xe]
  %v160 = vld [vmem:[%s112 + $0x88] sm:$0xe]
  %v193 = vunpack.c.l.b16 %v15
  %v194 = vunpack.c.l.b16 %v31
  %v195 = vunpack.c.l.b16 %v16
  %v196 = vunpack.c.l.b16 %v32
  %v197 = vunpack.c.l.b16 %v17
  %v198 = vunpack.c.l.b16 %v33
  %v199 = vunpack.c.l.b16 %v18
  %v200 = vunpack.c.l.b16 %v34
  %v201 = vunpack.c.l.b16 %v19
  %v202 = vunpack.c.l.b16 %v35
  %v203 = vunpack.c.l.b16 %v20
  %v204 = vunpack.c.l.b16 %v36
  %v205 = vunpack.c.l.b16 %v21
  %v206 = vunpack.c.l.b16 %v37
  %v207 = vunpack.c.l.b16 %v22
  %v208 = vunpack.c.l.b16 %v38
  %v209 = vunpack.c.l.b16 %v23
  %v210 = vunpack.c.l.b16 %v39
  %v211 = vunpack.c.l.b16 %v24
  %v212 = vunpack.c.l.b16 %v40
  %v213 = vunpack.c.l.b16 %v25
  %v214 = vunpack.c.l.b16 %v41
  %v215 = vunpack.c.l.b16 %v26
  %v216 = vunpack.c.l.b16 %v42
  %v217 = vunpack.c.l.b16 %v27
  %v218 = vunpack.c.l.b16 %v43
  %v219 = vunpack.c.l.b16 %v28
  %v220 = vunpack.c.l.b16 %v44
  %v221 = vunpack.c.l.b16 %v29
  %v222 = vunpack.c.l.b16 %v45
  %v223 = vunpack.c.l.b16 %v30
  %v224 = vunpack.c.l.b16 %v46
  %v225 = vpack.c.b16 %v194, %v193
  %v226 = vpack.c.b16 %v196, %v195
  %v227 = vpack.c.b16 %v198, %v197
  %v228 = vpack.c.b16 %v200, %v199
  %v229 = vpack.c.b16 %v202, %v201
  %v230 = vpack.c.b16 %v204, %v203
  %v231 = vpack.c.b16 %v206, %v205
  %v232 = vpack.c.b16 %v208, %v207
  %v233 = vpack.c.b16 %v210, %v209
  %v234 = vpack.c.b16 %v212, %v211
  %v235 = vpack.c.b16 %v214, %v213
  %v236 = vpack.c.b16 %v216, %v215
  %v237 = vpack.c.b16 %v218, %v217
  %v238 = vpack.c.b16 %v220, %v219
  %v239 = vpack.c.b16 %v222, %v221
  %v240 = vpack.c.b16 %v224, %v223
  %v242 = vshrl.u32 %v225, 16
  %v244 = vshll.u32 %v225, 16
  %v246 = vrot.slane %v244, 1
  %v247 = vor.u32 %v242, %v246
  %v249 = vshrl.u32 %v226, 16
  %v251 = vshll.u32 %v226, 16
  %v253 = vrot.slane %v251, 1
  %v254 = vor.u32 %v249, %v253
  %v256 = vshrl.u32 %v227, 16
  %v258 = vshll.u32 %v227, 16
  %v260 = vrot.slane %v258, 1
  %v261 = vor.u32 %v256, %v260
  %v263 = vshrl.u32 %v228, 16
  %v265 = vshll.u32 %v228, 16
  %v267 = vrot.slane %v265, 1
  %v268 = vor.u32 %v263, %v267
  %v270 = vshrl.u32 %v229, 16
  %v272 = vshll.u32 %v229, 16
  %v274 = vrot.slane %v272, 1
  %v275 = vor.u32 %v270, %v274
  %v277 = vshrl.u32 %v230, 16
  %v279 = vshll.u32 %v230, 16
  %v281 = vrot.slane %v279, 1
  %v282 = vor.u32 %v277, %v281
  %v284 = vshrl.u32 %v231, 16
  %v286 = vshll.u32 %v231, 16
  %v288 = vrot.slane %v286, 1
  %v289 = vor.u32 %v284, %v288
  %v291 = vshrl.u32 %v232, 16
  %v293 = vshll.u32 %v232, 16
  %v295 = vrot.slane %v293, 1
  %v296 = vor.u32 %v291, %v295
  %v298 = vshrl.u32 %v233, 16
  %v300 = vshll.u32 %v233, 16
  %v302 = vrot.slane %v300, 1
  %v303 = vor.u32 %v298, %v302
  %v305 = vshrl.u32 %v234, 16
  %v307 = vshll.u32 %v234, 16
  %v309 = vrot.slane %v307, 1
  %v310 = vor.u32 %v305, %v309
  %v312 = vshrl.u32 %v235, 16
  %v314 = vshll.u32 %v235, 16
  %v316 = vrot.slane %v314, 1
  %v317 = vor.u32 %v312, %v316
  %v319 = vshrl.u32 %v236, 16
  %v321 = vshll.u32 %v236, 16
  %v323 = vrot.slane %v321, 1
  %v324 = vor.u32 %v319, %v323
  %v326 = vshrl.u32 %v237, 16
  %v328 = vshll.u32 %v237, 16
  %v330 = vrot.slane %v328, 1
  %v331 = vor.u32 %v326, %v330
  %v333 = vshrl.u32 %v238, 16
  %v335 = vshll.u32 %v238, 16
  %v337 = vrot.slane %v335, 1
  %v338 = vor.u32 %v333, %v337
  %v340 = vshrl.u32 %v239, 16
  %v342 = vshll.u32 %v239, 16
  %v344 = vrot.slane %v342, 1
  %v345 = vor.u32 %v340, %v344
  %v347 = vshrl.u32 %v240, 16
  %v349 = vshll.u32 %v240, 16
  %v351 = vrot.slane %v349, 1
  %v352 = vor.u32 %v347, %v351
  %353 = vrot.lane.b32.xlu0 %v247, 32
  %v354 = vpop.permute.xlu0 %353
  %355 = vrot.lane.b32.xlu0 %v254, 32
  %v356 = vpop.permute.xlu0 %355
  %357 = vrot.lane.b32.xlu0 %v261, 32
  %v358 = vpop.permute.xlu0 %357
  %359 = vrot.lane.b32.xlu0 %v268, 32
  %v360 = vpop.permute.xlu0 %359
  %361 = vrot.lane.b32.xlu0 %v275, 32
  %v362 = vpop.permute.xlu0 %361
  %363 = vrot.lane.b32.xlu0 %v282, 32
  %v364 = vpop.permute.xlu0 %363
  %365 = vrot.lane.b32.xlu0 %v289, 32
  %v366 = vpop.permute.xlu0 %365
  %367 = vrot.lane.b32.xlu0 %v296, 32
  %v368 = vpop.permute.xlu0 %367
  %369 = vrot.lane.b32.xlu0 %v303, 32
  %v370 = vpop.permute.xlu0 %369
  %371 = vrot.lane.b32.xlu0 %v310, 32
  %v372 = vpop.permute.xlu0 %371
  %373 = vrot.lane.b32.xlu0 %v317, 32
  %v374 = vpop.permute.xlu0 %373
  %375 = vrot.lane.b32.xlu0 %v324, 32
  %v376 = vpop.permute.xlu0 %375
  %377 = vrot.lane.b32.xlu0 %v331, 32
  %v378 = vpop.permute.xlu0 %377
  %379 = vrot.lane.b32.xlu0 %v338, 32
  %v380 = vpop.permute.xlu0 %379
  %381 = vrot.lane.b32.xlu0 %v345, 32
  %v382 = vpop.permute.xlu0 %381
  %383 = vrot.lane.b32.xlu0 %v352, 32
  %v384 = vpop.permute.xlu0 %383
  %v401 = vunpack.c.l.b16 %v47
  %v402 = vunpack.c.l.b16 %v48
  %v403 = vunpack.c.l.b16 %v49
  %v404 = vunpack.c.l.b16 %v50
  %v405 = vunpack.c.l.b16 %v51
  %v406 = vunpack.c.l.b16 %v52
  %v407 = vunpack.c.l.b16 %v53
  %v408 = vunpack.c.l.b16 %v54
  %v409 = vunpack.c.l.b16 %v55
  %v410 = vunpack.c.l.b16 %v56
  %v411 = vunpack.c.l.b16 %v57
  %v412 = vunpack.c.l.b16 %v58
  %v413 = vunpack.c.l.b16 %v59
  %v414 = vunpack.c.l.b16 %v60
  %v415 = vunpack.c.l.b16 %v61
  %v416 = vunpack.c.l.b16 %v62
  %v417 = vpack.c.b16 %v194, %v401
  %v418 = vpack.c.b16 %v196, %v402
  %v419 = vpack.c.b16 %v198, %v403
  %v420 = vpack.c.b16 %v200, %v404
  %v421 = vpack.c.b16 %v202, %v405
  %v422 = vpack.c.b16 %v204, %v406
  %v423 = vpack.c.b16 %v206, %v407
  %v424 = vpack.c.b16 %v208, %v408
  %v425 = vpack.c.b16 %v210, %v409
  %v426 = vpack.c.b16 %v212, %v410
  %v427 = vpack.c.b16 %v214, %v411
  %v428 = vpack.c.b16 %v216, %v412
  %v429 = vpack.c.b16 %v218, %v413
  %v430 = vpack.c.b16 %v220, %v414
  %v431 = vpack.c.b16 %v222, %v415
  %v432 = vpack.c.b16 %v224, %v416
  %v433 = vrot.slane %v417, 1
  %v434 = vrot.slane %v418, 1
  %v435 = vrot.slane %v419, 1
  %v436 = vrot.slane %v420, 1
  %v437 = vrot.slane %v421, 1
  %v438 = vrot.slane %v422, 1
  %v439 = vrot.slane %v423, 1
  %v440 = vrot.slane %v424, 1
  %v441 = vrot.slane %v425, 1
  %v442 = vrot.slane %v426, 1
  %v443 = vrot.slane %v427, 1
  %v444 = vrot.slane %v428, 1
  %v445 = vrot.slane %v429, 1
  %v446 = vrot.slane %v430, 1
  %v447 = vrot.slane %v431, 1
  %v448 = vrot.slane %v432, 1
  %449 = vrot.lane.b32.xlu0 %v433, 64
  %v450 = vpop.permute.xlu0 %449
  %451 = vrot.lane.b32.xlu0 %v434, 64
  %v452 = vpop.permute.xlu0 %451
  %453 = vrot.lane.b32.xlu0 %v435, 64
  %v454 = vpop.permute.xlu0 %453
  %455 = vrot.lane.b32.xlu0 %v436, 64
  %v456 = vpop.permute.xlu0 %455
  %457 = vrot.lane.b32.xlu0 %v437, 64
  %v458 = vpop.permute.xlu0 %457
  %459 = vrot.lane.b32.xlu0 %v438, 64
  %v460 = vpop.permute.xlu0 %459
  %461 = vrot.lane.b32.xlu0 %v439, 64
  %v462 = vpop.permute.xlu0 %461
  %463 = vrot.lane.b32.xlu0 %v440, 64
  %v464 = vpop.permute.xlu0 %463
  %465 = vrot.lane.b32.xlu0 %v441, 64
  %v466 = vpop.permute.xlu0 %465
  %467 = vrot.lane.b32.xlu0 %v442, 64
  %v468 = vpop.permute.xlu0 %467
  %469 = vrot.lane.b32.xlu0 %v443, 64
  %v470 = vpop.permute.xlu0 %469
  %471 = vrot.lane.b32.xlu0 %v444, 64
  %v472 = vpop.permute.xlu0 %471
  %473 = vrot.lane.b32.xlu0 %v445, 64
  %v474 = vpop.permute.xlu0 %473
  %475 = vrot.lane.b32.xlu0 %v446, 64
  %v476 = vpop.permute.xlu0 %475
  %477 = vrot.lane.b32.xlu0 %v447, 64
  %v478 = vpop.permute.xlu0 %477
  %479 = vrot.lane.b32.xlu0 %v448, 64
  %v480 = vpop.permute.xlu0 %479
  %v497 = vunpack.c.l.b16 %v64
  %v498 = vunpack.c.l.b16 %v65
  %v499 = vunpack.c.l.b16 %v66
  %v500 = vunpack.c.l.b16 %v67
  %v501 = vunpack.c.l.b16 %v68
  %v502 = vunpack.c.l.b16 %v69
  %v503 = vunpack.c.l.b16 %v70
  %v504 = vunpack.c.l.b16 %v71
  %v505 = vunpack.c.l.b16 %v72
  %v506 = vunpack.c.l.b16 %v73
  %v507 = vunpack.c.l.b16 %v74
  %v508 = vunpack.c.l.b16 %v75
  %v509 = vunpack.c.l.b16 %v76
  %v510 = vunpack.c.l.b16 %v77
  %v511 = vunpack.c.l.b16 %v78
  %v512 = vunpack.c.l.b16 %v79
  %v513 = vpack.c.b16 %v497, %v497
  %v514 = vpack.c.b16 %v498, %v498
  %v515 = vpack.c.b16 %v499, %v499
  %v516 = vpack.c.b16 %v500, %v500
  %v517 = vpack.c.b16 %v501, %v501
  %v518 = vpack.c.b16 %v502, %v502
  %v519 = vpack.c.b16 %v503, %v503
  %v520 = vpack.c.b16 %v504, %v504
  %v521 = vpack.c.b16 %v505, %v505
  %v522 = vpack.c.b16 %v506, %v506
  %v523 = vpack.c.b16 %v507, %v507
  %v524 = vpack.c.b16 %v508, %v508
  %v525 = vpack.c.b16 %v509, %v509
  %v526 = vpack.c.b16 %v510, %v510
  %v527 = vpack.c.b16 %v511, %v511
  %v528 = vpack.c.b16 %v512, %v512
  %529 = vrot.lane.b32.xlu0 %v513, 96
  %v530 = vpop.permute.xlu0 %529
  %531 = vrot.lane.b32.xlu0 %v514, 96
  %v532 = vpop.permute.xlu0 %531
  %533 = vrot.lane.b32.xlu0 %v515, 96
  %v534 = vpop.permute.xlu0 %533
  %535 = vrot.lane.b32.xlu0 %v516, 96
  %v536 = vpop.permute.xlu0 %535
  %537 = vrot.lane.b32.xlu0 %v517, 96
  %v538 = vpop.permute.xlu0 %537
  %539 = vrot.lane.b32.xlu0 %v518, 96
  %v540 = vpop.permute.xlu0 %539
  %541 = vrot.lane.b32.xlu0 %v519, 96
  %v542 = vpop.permute.xlu0 %541
  %543 = vrot.lane.b32.xlu0 %v520, 96
  %v544 = vpop.permute.xlu0 %543
  %545 = vrot.lane.b32.xlu0 %v521, 96
  %v546 = vpop.permute.xlu0 %545
  %547 = vrot.lane.b32.xlu0 %v522, 96
  %v548 = vpop.permute.xlu0 %547
  %549 = vrot.lane.b32.xlu0 %v523, 96
  %v550 = vpop.permute.xlu0 %549
  %551 = vrot.lane.b32.xlu0 %v524, 96
  %v552 = vpop.permute.xlu0 %551
  %553 = vrot.lane.b32.xlu0 %v525, 96
  %v554 = vpop.permute.xlu0 %553
  %555 = vrot.lane.b32.xlu0 %v526, 96
  %v556 = vpop.permute.xlu0 %555
  %557 = vrot.lane.b32.xlu0 %v527, 96
  %v558 = vpop.permute.xlu0 %557
  %559 = vrot.lane.b32.xlu0 %v528, 96
  %v560 = vpop.permute.xlu0 %559
  %v577 = vunpack.c.l.b16 %v80
  %v578 = vunpack.c.l.b16 %v81
  %v579 = vunpack.c.l.b16 %v82
  %v580 = vunpack.c.l.b16 %v83
  %v581 = vunpack.c.l.b16 %v84
  %v582 = vunpack.c.l.b16 %v85
  %v583 = vunpack.c.l.b16 %v86
  %v584 = vunpack.c.l.b16 %v87
  %v585 = vunpack.c.l.b16 %v88
  %v586 = vunpack.c.l.b16 %v89
  %v587 = vunpack.c.l.b16 %v90
  %v588 = vunpack.c.l.b16 %v91
  %v589 = vunpack.c.l.b16 %v92
  %v590 = vunpack.c.l.b16 %v93
  %v591 = vunpack.c.l.b16 %v94
  %v592 = vunpack.c.l.b16 %v95
  %v593 = vpack.c.b16 %v577, %v497
  %v594 = vpack.c.b16 %v578, %v498
  %v595 = vpack.c.b16 %v579, %v499
  %v596 = vpack.c.b16 %v580, %v500
  %v597 = vpack.c.b16 %v581, %v501
  %v598 = vpack.c.b16 %v582, %v502
  %v599 = vpack.c.b16 %v583, %v503
  %v600 = vpack.c.b16 %v584, %v504
  %v601 = vpack.c.b16 %v585, %v505
  %v602 = vpack.c.b16 %v586, %v506
  %v603 = vpack.c.b16 %v587, %v507
  %v604 = vpack.c.b16 %v588, %v508
  %v605 = vpack.c.b16 %v589, %v509
  %v606 = vpack.c.b16 %v590, %v510
  %v607 = vpack.c.b16 %v591, %v511
  %v608 = vpack.c.b16 %v592, %v512
  %v610 = vshrl.u32 %v593, 16
  %v612 = vshll.u32 %v593, 16
  %v614 = vrot.slane %v612, 1
  %v615 = vor.u32 %v610, %v614
  %v617 = vshrl.u32 %v594, 16
  %v619 = vshll.u32 %v594, 16
  %v621 = vrot.slane %v619, 1
  %v622 = vor.u32 %v617, %v621
  %v624 = vshrl.u32 %v595, 16
  %v626 = vshll.u32 %v595, 16
  %v628 = vrot.slane %v626, 1
  %v629 = vor.u32 %v624, %v628
  %v631 = vshrl.u32 %v596, 16
  %v633 = vshll.u32 %v596, 16
  %v635 = vrot.slane %v633, 1
  %v636 = vor.u32 %v631, %v635
  %v638 = vshrl.u32 %v597, 16
  %v640 = vshll.u32 %v597, 16
  %v642 = vrot.slane %v640, 1
  %v643 = vor.u32 %v638, %v642
  %v645 = vshrl.u32 %v598, 16
  %v647 = vshll.u32 %v598, 16
  %v649 = vrot.slane %v647, 1
  %v650 = vor.u32 %v645, %v649
  %v652 = vshrl.u32 %v599, 16
  %v654 = vshll.u32 %v599, 16
  %v656 = vrot.slane %v654, 1
  %v657 = vor.u32 %v652, %v656
  %v659 = vshrl.u32 %v600, 16
  %v661 = vshll.u32 %v600, 16
  %v663 = vrot.slane %v661, 1
  %v664 = vor.u32 %v659, %v663
  %v666 = vshrl.u32 %v601, 16
  %v668 = vshll.u32 %v601, 16
  %v670 = vrot.slane %v668, 1
  %v671 = vor.u32 %v666, %v670
  %v673 = vshrl.u32 %v602, 16
  %v675 = vshll.u32 %v602, 16
  %v677 = vrot.slane %v675, 1
  %v678 = vor.u32 %v673, %v677
  %v680 = vshrl.u32 %v603, 16
  %v682 = vshll.u32 %v603, 16
  %v684 = vrot.slane %v682, 1
  %v685 = vor.u32 %v680, %v684
  %v687 = vshrl.u32 %v604, 16
  %v689 = vshll.u32 %v604, 16
  %v691 = vrot.slane %v689, 1
  %v692 = vor.u32 %v687, %v691
  %v694 = vshrl.u32 %v605, 16
  %v696 = vshll.u32 %v605, 16
  %v698 = vrot.slane %v696, 1
  %v699 = vor.u32 %v694, %v698
  %v701 = vshrl.u32 %v606, 16
  %v703 = vshll.u32 %v606, 16
  %v705 = vrot.slane %v703, 1
  %v706 = vor.u32 %v701, %v705
  %v708 = vshrl.u32 %v607, 16
  %v710 = vshll.u32 %v607, 16
  %v712 = vrot.slane %v710, 1
  %v713 = vor.u32 %v708, %v712
  %v715 = vshrl.u32 %v608, 16
  %v717 = vshll.u32 %v608, 16
  %v719 = vrot.slane %v717, 1
  %v720 = vor.u32 %v715, %v719
  %v737 = vunpack.c.l.b16 %v96
  %v738 = vunpack.c.l.b16 %v97
  %v739 = vunpack.c.l.b16 %v98
  %v740 = vunpack.c.l.b16 %v99
  %v741 = vunpack.c.l.b16 %v100
  %v742 = vunpack.c.l.b16 %v101
  %v743 = vunpack.c.l.b16 %v102
  %v744 = vunpack.c.l.b16 %v103
  %v745 = vunpack.c.l.b16 %v104
  %v746 = vunpack.c.l.b16 %v105
  %v747 = vunpack.c.l.b16 %v106
  %v748 = vunpack.c.l.b16 %v107
  %v749 = vunpack.c.l.b16 %v108
  %v750 = vunpack.c.l.b16 %v109
  %v751 = vunpack.c.l.b16 %v110
  %v752 = vunpack.c.l.b16 %v111
  %v753 = vpack.c.b16 %v577, %v737
  %v754 = vpack.c.b16 %v578, %v738
  %v755 = vpack.c.b16 %v579, %v739
  %v756 = vpack.c.b16 %v580, %v740
  %v757 = vpack.c.b16 %v581, %v741
  %v758 = vpack.c.b16 %v582, %v742
  %v759 = vpack.c.b16 %v583, %v743
  %v760 = vpack.c.b16 %v584, %v744
  %v761 = vpack.c.b16 %v585, %v745
  %v762 = vpack.c.b16 %v586, %v746
  %v763 = vpack.c.b16 %v587, %v747
  %v764 = vpack.c.b16 %v588, %v748
  %v765 = vpack.c.b16 %v589, %v749
  %v766 = vpack.c.b16 %v590, %v750
  %v767 = vpack.c.b16 %v591, %v751
  %v768 = vpack.c.b16 %v592, %v752
  %v769 = vrot.slane %v753, 1
  %v770 = vrot.slane %v754, 1
  %v771 = vrot.slane %v755, 1
  %v772 = vrot.slane %v756, 1
  %v773 = vrot.slane %v757, 1
  %v774 = vrot.slane %v758, 1
  %v775 = vrot.slane %v759, 1
  %v776 = vrot.slane %v760, 1
  %v777 = vrot.slane %v761, 1
  %v778 = vrot.slane %v762, 1
  %v779 = vrot.slane %v763, 1
  %v780 = vrot.slane %v764, 1
  %v781 = vrot.slane %v765, 1
  %v782 = vrot.slane %v766, 1
  %v783 = vrot.slane %v767, 1
  %v784 = vrot.slane %v768, 1
  %785 = vrot.lane.b32.xlu0 %v769, 32
  %v786 = vpop.permute.xlu0 %785
  %787 = vrot.lane.b32.xlu0 %v770, 32
  %v788 = vpop.permute.xlu0 %787
  %789 = vrot.lane.b32.xlu0 %v771, 32
  %v790 = vpop.permute.xlu0 %789
  %791 = vrot.lane.b32.xlu0 %v772, 32
  %v792 = vpop.permute.xlu0 %791
  %793 = vrot.lane.b32.xlu0 %v773, 32
  %v794 = vpop.permute.xlu0 %793
  %795 = vrot.lane.b32.xlu0 %v774, 32
  %v796 = vpop.permute.xlu0 %795
  %797 = vrot.lane.b32.xlu0 %v775, 32
  %v798 = vpop.permute.xlu0 %797
  %799 = vrot.lane.b32.xlu0 %v776, 32
  %v800 = vpop.permute.xlu0 %799
  %801 = vrot.lane.b32.xlu0 %v777, 32
  %v802 = vpop.permute.xlu0 %801
  %803 = vrot.lane.b32.xlu0 %v778, 32
  %v804 = vpop.permute.xlu0 %803
  %805 = vrot.lane.b32.xlu0 %v779, 32
  %v806 = vpop.permute.xlu0 %805
  %807 = vrot.lane.b32.xlu0 %v780, 32
  %v808 = vpop.permute.xlu0 %807
  %809 = vrot.lane.b32.xlu0 %v781, 32
  %v810 = vpop.permute.xlu0 %809
  %811 = vrot.lane.b32.xlu0 %v782, 32
  %v812 = vpop.permute.xlu0 %811
  %813 = vrot.lane.b32.xlu0 %v783, 32
  %v814 = vpop.permute.xlu0 %813
  %815 = vrot.lane.b32.xlu0 %v784, 32
  %v816 = vpop.permute.xlu0 %815
  %v833 = vunpack.c.l.b16 %v113
  %v834 = vunpack.c.l.b16 %v114
  %v835 = vunpack.c.l.b16 %v115
  %v836 = vunpack.c.l.b16 %v116
  %v837 = vunpack.c.l.b16 %v117
  %v838 = vunpack.c.l.b16 %v118
  %v839 = vunpack.c.l.b16 %v119
  %v840 = vunpack.c.l.b16 %v120
  %v841 = vunpack.c.l.b16 %v121
  %v842 = vunpack.c.l.b16 %v122
  %v843 = vunpack.c.l.b16 %v123
  %v844 = vunpack.c.l.b16 %v124
  %v845 = vunpack.c.l.b16 %v125
  %v846 = vunpack.c.l.b16 %v126
  %v847 = vunpack.c.l.b16 %v127
  %v848 = vunpack.c.l.b16 %v128
  %v849 = vpack.c.b16 %v833, %v833
  %v850 = vpack.c.b16 %v834, %v834
  %v851 = vpack.c.b16 %v835, %v835
  %v852 = vpack.c.b16 %v836, %v836
  %v853 = vpack.c.b16 %v837, %v837
  %v854 = vpack.c.b16 %v838, %v838
  %v855 = vpack.c.b16 %v839, %v839
  %v856 = vpack.c.b16 %v840, %v840
  %v857 = vpack.c.b16 %v841, %v841
  %v858 = vpack.c.b16 %v842, %v842
  %v859 = vpack.c.b16 %v843, %v843
  %v860 = vpack.c.b16 %v844, %v844
  %v861 = vpack.c.b16 %v845, %v845
  %v862 = vpack.c.b16 %v846, %v846
  %v863 = vpack.c.b16 %v847, %v847
  %v864 = vpack.c.b16 %v848, %v848
  %865 = vrot.lane.b32.xlu0 %v849, 64
  %v866 = vpop.permute.xlu0 %865
  %867 = vrot.lane.b32.xlu0 %v850, 64
  %v868 = vpop.permute.xlu0 %867
  %869 = vrot.lane.b32.xlu0 %v851, 64
  %v870 = vpop.permute.xlu0 %869
  %871 = vrot.lane.b32.xlu0 %v852, 64
  %v872 = vpop.permute.xlu0 %871
  %873 = vrot.lane.b32.xlu0 %v853, 64
  %v874 = vpop.permute.xlu0 %873
  %875 = vrot.lane.b32.xlu0 %v854, 64
  %v876 = vpop.permute.xlu0 %875
  %877 = vrot.lane.b32.xlu0 %v855, 64
  %v878 = vpop.permute.xlu0 %877
  %879 = vrot.lane.b32.xlu0 %v856, 64
  %v880 = vpop.permute.xlu0 %879
  %881 = vrot.lane.b32.xlu0 %v857, 64
  %v882 = vpop.permute.xlu0 %881
  %883 = vrot.lane.b32.xlu0 %v858, 64
  %v884 = vpop.permute.xlu0 %883
  %885 = vrot.lane.b32.xlu0 %v859, 64
  %v886 = vpop.permute.xlu0 %885
  %887 = vrot.lane.b32.xlu0 %v860, 64
  %v888 = vpop.permute.xlu0 %887
  %889 = vrot.lane.b32.xlu0 %v861, 64
  %v890 = vpop.permute.xlu0 %889
  %891 = vrot.lane.b32.xlu0 %v862, 64
  %v892 = vpop.permute.xlu0 %891
  %893 = vrot.lane.b32.xlu0 %v863, 64
  %v894 = vpop.permute.xlu0 %893
  %895 = vrot.lane.b32.xlu0 %v864, 64
  %v896 = vpop.permute.xlu0 %895
  %v913 = vunpack.c.l.b16 %v129
  %v914 = vunpack.c.l.b16 %v130
  %v915 = vunpack.c.l.b16 %v131
  %v916 = vunpack.c.l.b16 %v132
  %v917 = vunpack.c.l.b16 %v133
  %v918 = vunpack.c.l.b16 %v134
  %v919 = vunpack.c.l.b16 %v135
  %v920 = vunpack.c.l.b16 %v136
  %v921 = vunpack.c.l.b16 %v137
  %v922 = vunpack.c.l.b16 %v138
  %v923 = vunpack.c.l.b16 %v139
  %v924 = vunpack.c.l.b16 %v140
  %v925 = vunpack.c.l.b16 %v141
  %v926 = vunpack.c.l.b16 %v142
  %v927 = vunpack.c.l.b16 %v143
  %v928 = vunpack.c.l.b16 %v144
  %v929 = vpack.c.b16 %v913, %v833
  %v930 = vpack.c.b16 %v914, %v834
  %v931 = vpack.c.b16 %v915, %v835
  %v932 = vpack.c.b16 %v916, %v836
  %v933 = vpack.c.b16 %v917, %v837
  %v934 = vpack.c.b16 %v918, %v838
  %v935 = vpack.c.b16 %v919, %v839
  %v936 = vpack.c.b16 %v920, %v840
  %v937 = vpack.c.b16 %v921, %v841
  %v938 = vpack.c.b16 %v922, %v842
  %v939 = vpack.c.b16 %v923, %v843
  %v940 = vpack.c.b16 %v924, %v844
  %v941 = vpack.c.b16 %v925, %v845
  %v942 = vpack.c.b16 %v926, %v846
  %v943 = vpack.c.b16 %v927, %v847
  %v944 = vpack.c.b16 %v928, %v848
  %v946 = vshrl.u32 %v929, 16
  %v948 = vshll.u32 %v929, 16
  %v950 = vrot.slane %v948, 1
  %v951 = vor.u32 %v946, %v950
  %v953 = vshrl.u32 %v930, 16
  %v955 = vshll.u32 %v930, 16
  %v957 = vrot.slane %v955, 1
  %v958 = vor.u32 %v953, %v957
  %v960 = vshrl.u32 %v931, 16
  %v962 = vshll.u32 %v931, 16
  %v964 = vrot.slane %v962, 1
  %v965 = vor.u32 %v960, %v964
  %v967 = vshrl.u32 %v932, 16
  %v969 = vshll.u32 %v932, 16
  %v971 = vrot.slane %v969, 1
  %v972 = vor.u32 %v967, %v971
  %v974 = vshrl.u32 %v933, 16
  %v976 = vshll.u32 %v933, 16
  %v978 = vrot.slane %v976, 1
  %v979 = vor.u32 %v974, %v978
  %v981 = vshrl.u32 %v934, 16
  %v983 = vshll.u32 %v934, 16
  %v985 = vrot.slane %v983, 1
  %v986 = vor.u32 %v981, %v985
  %v988 = vshrl.u32 %v935, 16
  %v990 = vshll.u32 %v935, 16
  %v992 = vrot.slane %v990, 1
  %v993 = vor.u32 %v988, %v992
  %v995 = vshrl.u32 %v936, 16
  %v997 = vshll.u32 %v936, 16
  %v999 = vrot.slane %v997, 1
  %v1000 = vor.u32 %v995, %v999
  %v1002 = vshrl.u32 %v937, 16
  %v1004 = vshll.u32 %v937, 16
  %v1006 = vrot.slane %v1004, 1
  %v1007 = vor.u32 %v1002, %v1006
  %v1009 = vshrl.u32 %v938, 16
  %v1011 = vshll.u32 %v938, 16
  %v1013 = vrot.slane %v1011, 1
  %v1014 = vor.u32 %v1009, %v1013
  %v1016 = vshrl.u32 %v939, 16
  %v1018 = vshll.u32 %v939, 16
  %v1020 = vrot.slane %v1018, 1
  %v1021 = vor.u32 %v1016, %v1020
  %v1023 = vshrl.u32 %v940, 16
  %v1025 = vshll.u32 %v940, 16
  %v1027 = vrot.slane %v1025, 1
  %v1028 = vor.u32 %v1023, %v1027
  %v1030 = vshrl.u32 %v941, 16
  %v1032 = vshll.u32 %v941, 16
  %v1034 = vrot.slane %v1032, 1
  %v1035 = vor.u32 %v1030, %v1034
  %v1037 = vshrl.u32 %v942, 16
  %v1039 = vshll.u32 %v942, 16
  %v1041 = vrot.slane %v1039, 1
  %v1042 = vor.u32 %v1037, %v1041
  %v1044 = vshrl.u32 %v943, 16
  %v1046 = vshll.u32 %v943, 16
  %v1048 = vrot.slane %v1046, 1
  %v1049 = vor.u32 %v1044, %v1048
  %v1051 = vshrl.u32 %v944, 16
  %v1053 = vshll.u32 %v944, 16
  %v1055 = vrot.slane %v1053, 1
  %v1056 = vor.u32 %v1051, %v1055
  %1057 = vrot.lane.b32.xlu0 %v951, 96
  %v1058 = vpop.permute.xlu0 %1057
  %1059 = vrot.lane.b32.xlu0 %v958, 96
  %v1060 = vpop.permute.xlu0 %1059
  %1061 = vrot.lane.b32.xlu0 %v965, 96
  %v1062 = vpop.permute.xlu0 %1061
  %1063 = vrot.lane.b32.xlu0 %v972, 96
  %v1064 = vpop.permute.xlu0 %1063
  %1065 = vrot.lane.b32.xlu0 %v979, 96
  %v1066 = vpop.permute.xlu0 %1065
  %1067 = vrot.lane.b32.xlu0 %v986, 96
  %v1068 = vpop.permute.xlu0 %1067
  %1069 = vrot.lane.b32.xlu0 %v993, 96
  %v1070 = vpop.permute.xlu0 %1069
  %1071 = vrot.lane.b32.xlu0 %v1000, 96
  %v1072 = vpop.permute.xlu0 %1071
  %1073 = vrot.lane.b32.xlu0 %v1007, 96
  %v1074 = vpop.permute.xlu0 %1073
  %1075 = vrot.lane.b32.xlu0 %v1014, 96
  %v1076 = vpop.permute.xlu0 %1075
  %1077 = vrot.lane.b32.xlu0 %v1021, 96
  %v1078 = vpop.permute.xlu0 %1077
  %1079 = vrot.lane.b32.xlu0 %v1028, 96
  %v1080 = vpop.permute.xlu0 %1079
  %1081 = vrot.lane.b32.xlu0 %v1035, 96
  %v1082 = vpop.permute.xlu0 %1081
  %1083 = vrot.lane.b32.xlu0 %v1042, 96
  %v1084 = vpop.permute.xlu0 %1083
  %1085 = vrot.lane.b32.xlu0 %v1049, 96
  %v1086 = vpop.permute.xlu0 %1085
  %1087 = vrot.lane.b32.xlu0 %v1056, 96
  %v1088 = vpop.permute.xlu0 %1087
  %v1105 = vunpack.c.l.b16 %v145
  %v1106 = vunpack.c.l.b16 %v146
  %v1107 = vunpack.c.l.b16 %v147
  %v1108 = vunpack.c.l.b16 %v148
  %v1109 = vunpack.c.l.b16 %v149
  %v1110 = vunpack.c.l.b16 %v150
  %v1111 = vunpack.c.l.b16 %v151
  %v1112 = vunpack.c.l.b16 %v152
  %v1113 = vunpack.c.l.b16 %v153
  %v1114 = vunpack.c.l.b16 %v154
  %v1115 = vunpack.c.l.b16 %v155
  %v1116 = vunpack.c.l.b16 %v156
  %v1117 = vunpack.c.l.b16 %v157
  %v1118 = vunpack.c.l.b16 %v158
  %v1119 = vunpack.c.l.b16 %v159
  %v1120 = vunpack.c.l.b16 %v160
  %v1121 = vpack.c.b16 %v913, %v1105
  %v1122 = vpack.c.b16 %v914, %v1106
  %v1123 = vpack.c.b16 %v915, %v1107
  %v1124 = vpack.c.b16 %v916, %v1108
  %v1125 = vpack.c.b16 %v917, %v1109
  %v1126 = vpack.c.b16 %v918, %v1110
  %v1127 = vpack.c.b16 %v919, %v1111
  %v1128 = vpack.c.b16 %v920, %v1112
  %v1129 = vpack.c.b16 %v921, %v1113
  %v1130 = vpack.c.b16 %v922, %v1114
  %v1131 = vpack.c.b16 %v923, %v1115
  %v1132 = vpack.c.b16 %v924, %v1116
  %v1133 = vpack.c.b16 %v925, %v1117
  %v1134 = vpack.c.b16 %v926, %v1118
  %v1135 = vpack.c.b16 %v927, %v1119
  %v1136 = vpack.c.b16 %v928, %v1120
  %v1137 = vrot.slane %v1121, 1
  %v1138 = vrot.slane %v1122, 1
  %v1139 = vrot.slane %v1123, 1
  %v1140 = vrot.slane %v1124, 1
  %v1141 = vrot.slane %v1125, 1
  %v1142 = vrot.slane %v1126, 1
  %v1143 = vrot.slane %v1127, 1
  %v1144 = vrot.slane %v1128, 1
  %v1145 = vrot.slane %v1129, 1
  %v1146 = vrot.slane %v1130, 1
  %v1147 = vrot.slane %v1131, 1
  %v1148 = vrot.slane %v1132, 1
  %v1149 = vrot.slane %v1133, 1
  %v1150 = vrot.slane %v1134, 1
  %v1151 = vrot.slane %v1135, 1
  %v1152 = vrot.slane %v1136, 1
  %vm1153 = vcmask 261120
  %v1156 = vsel %vm1153, %v15, %v354
  %v1159 = vsel %vm1153, %v16, %v356
  %v1162 = vsel %vm1153, %v17, %v358
  %v1165 = vsel %vm1153, %v18, %v360
  %v1168 = vsel %vm1153, %v19, %v362
  %v1171 = vsel %vm1153, %v20, %v364
  %v1174 = vsel %vm1153, %v21, %v366
  %v1177 = vsel %vm1153, %v22, %v368
  %v1180 = vsel %vm1153, %v23, %v370
  %v1183 = vsel %vm1153, %v24, %v372
  %v1186 = vsel %vm1153, %v25, %v374
  %v1189 = vsel %vm1153, %v26, %v376
  %v1192 = vsel %vm1153, %v27, %v378
  %v1195 = vsel %vm1153, %v28, %v380
  %v1198 = vsel %vm1153, %v29, %v382
  %v1201 = vsel %vm1153, %v30, %v384
  %vm1202 = vcmask 523264
  %v1204 = vsel %vm1202, %v1156, %v450
  %v1206 = vsel %vm1202, %v1159, %v452
  %v1208 = vsel %vm1202, %v1162, %v454
  %v1210 = vsel %vm1202, %v1165, %v456
  %v1212 = vsel %vm1202, %v1168, %v458
  %v1214 = vsel %vm1202, %v1171, %v460
  %v1216 = vsel %vm1202, %v1174, %v462
  %v1218 = vsel %vm1202, %v1177, %v464
  %v1220 = vsel %vm1202, %v1180, %v466
  %v1222 = vsel %vm1202, %v1183, %v468
  %v1224 = vsel %vm1202, %v1186, %v470
  %v1226 = vsel %vm1202, %v1189, %v472
  %v1228 = vsel %vm1202, %v1192, %v474
  %v1230 = vsel %vm1202, %v1195, %v476
  %v1232 = vsel %vm1202, %v1198, %v478
  %v1234 = vsel %vm1202, %v1201, %v480
  %vm1235 = vcmask 785408
  %v1237 = vsel %vm1235, %v1204, %v530
  %v1239 = vsel %vm1235, %v1206, %v532
  %v1241 = vsel %vm1235, %v1208, %v534
  %v1243 = vsel %vm1235, %v1210, %v536
  %v1245 = vsel %vm1235, %v1212, %v538
  %v1247 = vsel %vm1235, %v1214, %v540
  %v1249 = vsel %vm1235, %v1216, %v542
  %v1251 = vsel %vm1235, %v1218, %v544
  %v1253 = vsel %vm1235, %v1220, %v546
  %v1255 = vsel %vm1235, %v1222, %v548
  %v1257 = vsel %vm1235, %v1224, %v550
  %v1259 = vsel %vm1235, %v1226, %v552
  %v1261 = vsel %vm1235, %v1228, %v554
  %v1263 = vsel %vm1235, %v1230, %v556
  %v1265 = vsel %vm1235, %v1232, %v558
  %v1267 = vsel %vm1235, %v1234, %v560
  %v1270 = vsel %vm1153, %v615, %v786
  %v1273 = vsel %vm1153, %v622, %v788
  %v1276 = vsel %vm1153, %v629, %v790
  %v1279 = vsel %vm1153, %v636, %v792
  %v1282 = vsel %vm1153, %v643, %v794
  %v1285 = vsel %vm1153, %v650, %v796
  %v1288 = vsel %vm1153, %v657, %v798
  %v1291 = vsel %vm1153, %v664, %v800
  %v1294 = vsel %vm1153, %v671, %v802
  %v1297 = vsel %vm1153, %v678, %v804
  %v1300 = vsel %vm1153, %v685, %v806
  %v1303 = vsel %vm1153, %v692, %v808
  %v1306 = vsel %vm1153, %v699, %v810
  %v1309 = vsel %vm1153, %v706, %v812
  %v1312 = vsel %vm1153, %v713, %v814
  %v1315 = vsel %vm1153, %v720, %v816
  %v1317 = vsel %vm1202, %v1270, %v866
  %v1319 = vsel %vm1202, %v1273, %v868
  %v1321 = vsel %vm1202, %v1276, %v870
  %v1323 = vsel %vm1202, %v1279, %v872
  %v1325 = vsel %vm1202, %v1282, %v874
  %v1327 = vsel %vm1202, %v1285, %v876
  %v1329 = vsel %vm1202, %v1288, %v878
  %v1331 = vsel %vm1202, %v1291, %v880
  %v1333 = vsel %vm1202, %v1294, %v882
  %v1335 = vsel %vm1202, %v1297, %v884
  %v1337 = vsel %vm1202, %v1300, %v886
  %v1339 = vsel %vm1202, %v1303, %v888
  %v1341 = vsel %vm1202, %v1306, %v890
  %v1343 = vsel %vm1202, %v1309, %v892
  %v1345 = vsel %vm1202, %v1312, %v894
  %v1347 = vsel %vm1202, %v1315, %v896
  %v1349 = vsel %vm1235, %v1317, %v1058
  %v1351 = vsel %vm1235, %v1319, %v1060
  %v1353 = vsel %vm1235, %v1321, %v1062
  %v1355 = vsel %vm1235, %v1323, %v1064
  %v1357 = vsel %vm1235, %v1325, %v1066
  %v1359 = vsel %vm1235, %v1327, %v1068
  %v1361 = vsel %vm1235, %v1329, %v1070
  %v1363 = vsel %vm1235, %v1331, %v1072
  %v1365 = vsel %vm1235, %v1333, %v1074
  %v1367 = vsel %vm1235, %v1335, %v1076
  %v1369 = vsel %vm1235, %v1337, %v1078
  %v1371 = vsel %vm1235, %v1339, %v1080
  %v1373 = vsel %vm1235, %v1341, %v1082
  %v1375 = vsel %vm1235, %v1343, %v1084
  %v1377 = vsel %vm1235, %v1345, %v1086
  %v1379 = vsel %vm1235, %v1347, %v1088
  %v1412 = vunpack.c.l.b16 %v1237
  %v1413 = vunpack.c.l.b16 %v1349
  %v1414 = vunpack.c.l.b16 %v1137
  %v1415 = vunpack.c.l.b16 %v1239
  %v1416 = vunpack.c.l.b16 %v1351
  %v1417 = vunpack.c.l.b16 %v1138
  %v1418 = vunpack.c.l.b16 %v1241
  %v1419 = vunpack.c.l.b16 %v1353
  %v1420 = vunpack.c.l.b16 %v1139
  %v1421 = vunpack.c.l.b16 %v1243
  %v1422 = vunpack.c.l.b16 %v1355
  %v1423 = vunpack.c.l.b16 %v1140
  %v1424 = vunpack.c.l.b16 %v1245
  %v1425 = vunpack.c.l.b16 %v1357
  %v1426 = vunpack.c.l.b16 %v1141
  %v1427 = vunpack.c.l.b16 %v1247
  %v1428 = vunpack.c.l.b16 %v1359
  %v1429 = vunpack.c.l.b16 %v1142
  %v1430 = vunpack.c.l.b16 %v1249
  %v1431 = vunpack.c.l.b16 %v1361
  %v1432 = vunpack.c.l.b16 %v1143
  %v1433 = vunpack.c.l.b16 %v1251
  %v1434 = vunpack.c.l.b16 %v1363
  %v1435 = vunpack.c.l.b16 %v1144
  %v1436 = vunpack.c.l.b16 %v1253
  %v1437 = vunpack.c.l.b16 %v1365
  %v1438 = vunpack.c.l.b16 %v1145
  %v1439 = vunpack.c.l.b16 %v1255
  %v1440 = vunpack.c.l.b16 %v1367
  %v1441 = vunpack.c.l.b16 %v1146
  %v1442 = vunpack.c.l.b16 %v1257
  %v1443 = vunpack.c.l.b16 %v1369
  %v1444 = vunpack.c.l.b16 %v1147
  %v1445 = vunpack.c.l.b16 %v1259
  %v1446 = vunpack.c.l.b16 %v1371
  %v1447 = vunpack.c.l.b16 %v1148
  %v1448 = vunpack.c.l.b16 %v1261
  %v1449 = vunpack.c.l.b16 %v1373
  %v1450 = vunpack.c.l.b16 %v1149
  %v1451 = vunpack.c.l.b16 %v1263
  %v1452 = vunpack.c.l.b16 %v1375
  %v1453 = vunpack.c.l.b16 %v1150
  %v1454 = vunpack.c.l.b16 %v1265
  %v1455 = vunpack.c.l.b16 %v1377
  %v1456 = vunpack.c.l.b16 %v1151
  %v1457 = vunpack.c.l.b16 %v1267
  %v1458 = vunpack.c.l.b16 %v1379
  %v1459 = vunpack.c.l.b16 %v1152
  %v1460 = vld [vmem:[%s1] sm:$0xf]
  %v1461 = vld [vmem:[%s1 + $0x4] sm:$0xf]
  %v1462 = vld [vmem:[%s1 + $0x8] sm:$0xf]
  %v1463 = vld [vmem:[%s1 + $0xc] sm:$0xf]
  %v1464 = vld [vmem:[%s1 + $0x10] sm:$0xf]
  %v1465 = vld [vmem:[%s1 + $0x14] sm:$0xf]
  %v1466 = vld [vmem:[%s1 + $0x18] sm:$0xf]
  %v1467 = vld [vmem:[%s1 + $0x1c] sm:$0xf]
  %v1468 = vld [vmem:[%s1 + $0x20] sm:$0xf]
  %v1469 = vld [vmem:[%s1 + $0x24] sm:$0xf]
  %v1470 = vld [vmem:[%s1 + $0x28] sm:$0xf]
  %v1471 = vld [vmem:[%s1 + $0x2c] sm:$0xf]
  %v1472 = vld [vmem:[%s1 + $0x30] sm:$0xf]
  %v1473 = vld [vmem:[%s1 + $0x34] sm:$0xf]
  %v1474 = vld [vmem:[%s1 + $0x38] sm:$0xf]
  %v1475 = vld [vmem:[%s1 + $0x3c] sm:$0xf]
  %v1476 = vld [vmem:[%s1 + $0x40] sm:$0xf]
  %v1477 = vld [vmem:[%s1 + $0x44] sm:$0xf]
  %v1478 = vld [vmem:[%s1 + $0x48] sm:$0xf]
  %v1479 = vld [vmem:[%s1 + $0x4c] sm:$0xf]
  %v1480 = vld [vmem:[%s1 + $0x50] sm:$0xf]
  %v1481 = vld [vmem:[%s1 + $0x54] sm:$0xf]
  %v1482 = vld [vmem:[%s1 + $0x58] sm:$0xf]
  %v1483 = vld [vmem:[%s1 + $0x5c] sm:$0xf]
  %v1484 = vld [vmem:[%s1 + $0x60] sm:$0xf]
  %v1485 = vld [vmem:[%s1 + $0x64] sm:$0xf]
  %v1486 = vld [vmem:[%s1 + $0x68] sm:$0xf]
  %v1487 = vld [vmem:[%s1 + $0x6c] sm:$0xf]
  %v1488 = vld [vmem:[%s1 + $0x70] sm:$0xf]
  %v1489 = vld [vmem:[%s1 + $0x74] sm:$0xf]
  %v1490 = vld [vmem:[%s1 + $0x78] sm:$0xf]
  %v1491 = vld [vmem:[%s1 + $0x7c] sm:$0xf]
  %v1492 = vld [vmem:[%s1 + $0x80] sm:$0xf]
  %v1493 = vld [vmem:[%s1 + $0x84] sm:$0xf]
  %v1494 = vld [vmem:[%s1 + $0x88] sm:$0xf]
  %v1495 = vld [vmem:[%s1 + $0x8c] sm:$0xf]
  %v1496 = vld [vmem:[%s2] sm:$0x1]
  %v1498 = vlaneseq
  %v1499 = vshrl.u32 %v1498, 7
  %v1500 = vsub.s32 0, %v1499
  %v1501 = vrot.slane %v1496, %v1500
  %v1503 = vpack.c.b16 %v1415, %v1412
  %v1504 = vpack.c.b16 %v1416, %v1413
  %v1505 = vpack.c.b16 %v1417, %v1414
  %v1506 = vpack.c.b16 %v1421, %v1418
  %v1507 = vpack.c.b16 %v1422, %v1419
  %v1508 = vpack.c.b16 %v1423, %v1420
  %v1509 = vpack.c.b16 %v1427, %v1424
  %v1510 = vpack.c.b16 %v1428, %v1425
  %v1511 = vpack.c.b16 %v1429, %v1426
  %v1512 = vpack.c.b16 %v1433, %v1430
  %v1513 = vpack.c.b16 %v1434, %v1431
  %v1514 = vpack.c.b16 %v1435, %v1432
  %v1515 = vpack.c.b16 %v1439, %v1436
  %v1516 = vpack.c.b16 %v1440, %v1437
  %v1517 = vpack.c.b16 %v1441, %v1438
  %v1518 = vpack.c.b16 %v1445, %v1442
  %v1519 = vpack.c.b16 %v1446, %v1443
  %v1520 = vpack.c.b16 %v1447, %v1444
  %v1521 = vpack.c.b16 %v1451, %v1448
  %v1522 = vpack.c.b16 %v1452, %v1449
  %v1523 = vpack.c.b16 %v1453, %v1450
  %v1524 = vpack.c.b16 %v1457, %v1454
  %v1525 = vpack.c.b16 %v1458, %v1455
  %v1526 = vpack.c.b16 %v1459, %v1456
  %v1579 = vunpack.c.l.b16 %v1460
  %v1580 = vunpack.c.l.b16 %v1461
  %v1581 = vunpack.c.l.b16 %v1462
  %v1582 = vunpack.c.l.b16 %v1463
  %v1583 = vunpack.c.l.b16 %v1464
  %v1584 = vunpack.c.l.b16 %v1465
  %v1585 = vunpack.c.l.b16 %v1466
  %v1586 = vunpack.c.l.b16 %v1467
  %v1587 = vunpack.c.l.b16 %v1468
  %v1588 = vunpack.c.l.b16 %v1469
  %v1589 = vunpack.c.l.b16 %v1470
  %v1590 = vunpack.c.l.b16 %v1471
  %v1591 = vunpack.c.l.b16 %v1472
  %v1592 = vunpack.c.l.b16 %v1473
  %v1593 = vunpack.c.l.b16 %v1474
  %v1594 = vunpack.c.l.b16 %v1475
  %v1595 = vunpack.c.l.b16 %v1476
  %v1596 = vunpack.c.l.b16 %v1477
  %v1597 = vunpack.c.l.b16 %v1478
  %v1598 = vunpack.c.l.b16 %v1479
  %v1599 = vunpack.c.l.b16 %v1480
  %v1600 = vunpack.c.l.b16 %v1481
  %v1601 = vunpack.c.l.b16 %v1482
  %v1602 = vunpack.c.l.b16 %v1483
  %v1603 = vunpack.c.l.b16 %v1484
  %v1604 = vunpack.c.l.b16 %v1485
  %v1605 = vunpack.c.l.b16 %v1486
  %v1606 = vunpack.c.l.b16 %v1487
  %v1607 = vunpack.c.l.b16 %v1488
  %v1608 = vunpack.c.l.b16 %v1489
  %v1609 = vunpack.c.l.b16 %v1490
  %v1610 = vunpack.c.l.b16 %v1491
  %v1611 = vunpack.c.l.b16 %v1492
  %v1612 = vunpack.c.l.b16 %v1493
  %v1613 = vunpack.c.l.b16 %v1494
  %v1614 = vunpack.c.l.b16 %v1495
  %v1615 = vpack.c.b16 %v1580, %v1579
  %v1616 = vpack.c.b16 %v1582, %v1581
  %v1617 = vpack.c.b16 %v1584, %v1583
  %v1618 = vpack.c.b16 %v1586, %v1585
  %v1619 = vpack.c.b16 %v1588, %v1587
  %v1620 = vpack.c.b16 %v1590, %v1589
  %v1621 = vpack.c.b16 %v1592, %v1591
  %v1622 = vpack.c.b16 %v1594, %v1593
  %v1623 = vpack.c.b16 %v1596, %v1595
  %v1624 = vpack.c.b16 %v1598, %v1597
  %v1625 = vpack.c.b16 %v1600, %v1599
  %v1626 = vpack.c.b16 %v1602, %v1601
  %v1627 = vpack.c.b16 %v1604, %v1603
  %v1628 = vpack.c.b16 %v1606, %v1605
  %v1629 = vpack.c.b16 %v1608, %v1607
  %v1630 = vpack.c.b16 %v1610, %v1609
  %v1631 = vpack.c.b16 %v1612, %v1611
  %v1632 = vpack.c.b16 %v1614, %v1613
  %v1652 = vsel %vm1153, %v1505, 0
  %v1655 = vsel %vm1153, %v1508, 0
  %v1658 = vsel %vm1153, %v1511, 0
  %v1661 = vsel %vm1153, %v1514, 0
  %v1664 = vsel %vm1153, %v1517, 0
  %v1667 = vsel %vm1153, %v1520, 0
  %v1670 = vsel %vm1153, %v1523, 0
  %v1673 = vsel %vm1153, %v1526, 0
  %1675 = vmatprep.subr.bf16.mxu0 0
  %1676 = vmatpush1.bf16.msra.mxu0 %v1615
  %1677 = vmatprep.subr.bf16.mxu0 0
  %1678 = vmatpush1.bf16.msra.mxu0 %v1616
  %1679 = vmatprep.subr.bf16.mxu0 0
  %1680 = vmatpush1.bf16.msra.mxu0 %v1617
  %1681 = vmatprep.subr.bf16.mxu0 0
  %1682 = vmatpush1.bf16.msra.mxu0 %v1618
  %1683 = vmatprep.subr.bf16.mxu0 0
  %1684 = vmatpush1.bf16.msra.mxu0 %v1619
  %1685 = vmatprep.subr.bf16.mxu0 0
  %1686 = vmatpush1.bf16.msra.mxu0 %v1620
  %1687 = vmatprep.subr.bf16.mxu0 0
  %1688 = vmatpush1.bf16.msra.mxu0 %v1621
  %1689 = vmatprep.subr.bf16.mxu0 0
  %1690 = vmatpush1.bf16.msra.mxu0 %v1622
  %1691 = vmatprep.subr.bf16.mxu0 0
  %1692 = vmatpush1.bf16.msra.mxu0 %v1623
  %1693 = vmatprep.subr.bf16.mxu0 0
  %1694 = vmatpush1.bf16.msra.mxu0 %v1624
  %1695 = vmatprep.subr.bf16.mxu0 0
  %1696 = vmatpush1.bf16.msra.mxu0 %v1625
  %1697 = vmatprep.subr.bf16.mxu0 0
  %1698 = vmatpush1.bf16.msra.mxu0 %v1626
  %1699 = vmatprep.subr.bf16.mxu0 0
  %1700 = vmatpush1.bf16.msra.mxu0 %v1627
  %1701 = vmatprep.subr.bf16.mxu0 0
  %1702 = vmatpush1.bf16.msra.mxu0 %v1628
  %1703 = vmatprep.subr.bf16.mxu0 0
  %1704 = vmatpush1.bf16.msra.mxu0 %v1629
  %1705 = vmatprep.subr.bf16.mxu0 0
  %1706 = vmatpush1.bf16.msra.mxu0 %v1630
  %1707 = vmatprep.mubr.bf16.mxu0 %v1504
  %1708 = vmatmul.mubr.bf16.gmra.mrb[0].mxu0 %v1503
  %v1709 = vpop.f32.mrb[0].mxu0
  %v1710 = vadd.f32 %v1501, %v1709
  %v1711 = vpop.f32.mrb[0].mxu0
  %v1712 = vpop.f32.mrb[0].mxu0
  %v1713 = vadd.f32 %v1501, %v1712
  %v1714 = vpop.f32.mrb[0].mxu0
  %1715 = vmatprep.mubr.bf16.mxu0 %v1507
  %1716 = vmatmul.mubr.bf16.gmra.mrb[0].mxu0 %v1506
  %v1717 = vpop.f32.mrb[0].mxu0
  %v1718 = vadd.f32 %v1501, %v1717
  %v1719 = vpop.f32.mrb[0].mxu0
  %v1720 = vpop.f32.mrb[0].mxu0
  %v1721 = vadd.f32 %v1501, %v1720
  %v1722 = vpop.f32.mrb[0].mxu0
  %1723 = vmatprep.mubr.bf16.mxu0 %v1510
  %1724 = vmatmul.mubr.bf16.gmra.mrb[0].mxu0 %v1509
  %v1725 = vpop.f32.mrb[0].mxu0
  %v1726 = vadd.f32 %v1501, %v1725
  %v1727 = vpop.f32.mrb[0].mxu0
  %v1728 = vpop.f32.mrb[0].mxu0
  %v1729 = vadd.f32 %v1501, %v1728
  %v1730 = vpop.f32.mrb[0].mxu0
  %1731 = vmatprep.mubr.bf16.mxu0 %v1513
  %1732 = vmatmul.mubr.bf16.gmra.mrb[0].mxu0 %v1512
  %v1733 = vpop.f32.mrb[0].mxu0
  %v1734 = vadd.f32 %v1501, %v1733
  %v1735 = vpop.f32.mrb[0].mxu0
  %v1736 = vpop.f32.mrb[0].mxu0
  %v1737 = vadd.f32 %v1501, %v1736
  %v1738 = vpop.f32.mrb[0].mxu0
  %1739 = vmatprep.mubr.bf16.mxu0 %v1516
  %1740 = vmatmul.mubr.bf16.gmra.mrb[0].mxu0 %v1515
  %v1741 = vpop.f32.mrb[0].mxu0
  %v1742 = vadd.f32 %v1501, %v1741
  %v1743 = vpop.f32.mrb[0].mxu0
  %v1744 = vpop.f32.mrb[0].mxu0
  %v1745 = vadd.f32 %v1501, %v1744
  %v1746 = vpop.f32.mrb[0].mxu0
  %1747 = vmatprep.mubr.bf16.mxu0 %v1519
  %1748 = vmatmul.mubr.bf16.gmra.mrb[0].mxu0 %v1518
  %v1749 = vpop.f32.mrb[0].mxu0
  %v1750 = vadd.f32 %v1501, %v1749
  %v1751 = vpop.f32.mrb[0].mxu0
  %v1752 = vpop.f32.mrb[0].mxu0
  %v1753 = vadd.f32 %v1501, %v1752
  %v1754 = vpop.f32.mrb[0].mxu0
  %1755 = vmatprep.mubr.bf16.mxu0 %v1522
  %1756 = vmatmul.mubr.bf16.gmra.mrb[0].mxu0 %v1521
  %v1757 = vpop.f32.mrb[0].mxu0
  %v1758 = vadd.f32 %v1501, %v1757
  %v1759 = vpop.f32.mrb[0].mxu0
  %v1760 = vpop.f32.mrb[0].mxu0
  %v1761 = vadd.f32 %v1501, %v1760
  %v1762 = vpop.f32.mrb[0].mxu0
  %1763 = vmatprep.mubr.bf16.mxu0 %v1525
  %1764 = vmatmul.mubr.bf16.gmra.mrb[0].mxu0 %v1524
  %v1765 = vpop.f32.mrb[0].mxu0
  %v1766 = vadd.f32 %v1501, %v1765
  %v1767 = vpop.f32.mrb[0].mxu0
  %v1768 = vpop.f32.mrb[0].mxu0
  %v1769 = vadd.f32 %v1501, %v1768
  %v1770 = vpop.f32.mrb[0].mxu0
  %1771 = vdwg.mxu0
  %1772 = vmatprep.subr.bf16.mxu0 0
  %1773 = vmatpush1.bf16.msra.mxu0 %v1631
  %1774 = vmatprep.subr.bf16.mxu0 0
  %1775 = vmatpush1.bf16.msra.mxu0 %v1632
  %1776 = vmatprep.subr.bf16.mxu0 0
  %1777 = vmatpush1.bf16.msra.mxu0 0
  %1778 = vmatprep.subr.bf16.mxu0 0
  %1779 = vmatpush1.bf16.msra.mxu0 0
  %1780 = vmatprep.subr.bf16.mxu0 0
  %1781 = vmatpush1.bf16.msra.mxu0 0
  %1782 = vmatprep.subr.bf16.mxu0 0
  %1783 = vmatpush1.bf16.msra.mxu0 0
  %1784 = vmatprep.subr.bf16.mxu0 0
  %1785 = vmatpush1.bf16.msra.mxu0 0
  %1786 = vmatprep.subr.bf16.mxu0 0
  %1787 = vmatpush1.bf16.msra.mxu0 0
  %1788 = vmatprep.subr.bf16.mxu0 0
  %1789 = vmatpush1.bf16.msra.mxu0 0
  %1790 = vmatprep.subr.bf16.mxu0 0
  %1791 = vmatpush1.bf16.msra.mxu0 0
  %1792 = vmatprep.subr.bf16.mxu0 0
  %1793 = vmatpush1.bf16.msra.mxu0 0
  %1794 = vmatprep.subr.bf16.mxu0 0
  %1795 = vmatpush1.bf16.msra.mxu0 0
  %1796 = vmatprep.subr.bf16.mxu0 0
  %1797 = vmatpush1.bf16.msra.mxu0 0
  %1798 = vmatprep.subr.bf16.mxu0 0
  %1799 = vmatpush1.bf16.msra.mxu0 0
  %1800 = vmatprep.subr.bf16.mxu0 0
  %1801 = vmatpush1.bf16.msra.mxu0 0
  %1802 = vmatprep.subr.bf16.mxu0 0
  %1803 = vmatpush1.bf16.msra.mxu0 0
  %1804 = vmatprep.mubr.bf16.mxu0 0
  %1805 = vmatmul.mubr.bf16.gmra.mrb[0].mxu0 %v1652
  %v1806 = vpop.f32.mrb[0].mxu0
  %v1807 = vadd.f32 %v1710, %v1806
  %v1808 = vpop.f32.mrb[0].mxu0
  %v1809 = vpop.f32.mrb[0].mxu0
  %v1810 = vadd.f32 %v1713, %v1809
  %v1811 = vpop.f32.mrb[0].mxu0
  %1812 = vmatprep.mubr.bf16.mxu0 0
  %1813 = vmatmul.mubr.bf16.gmra.mrb[0].mxu0 %v1655
  %v1814 = vpop.f32.mrb[0].mxu0
  %v1815 = vadd.f32 %v1718, %v1814
  %v1816 = vpop.f32.mrb[0].mxu0
  %v1817 = vpop.f32.mrb[0].mxu0
  %v1818 = vadd.f32 %v1721, %v1817
  %v1819 = vpop.f32.mrb[0].mxu0
  %1820 = vmatprep.mubr.bf16.mxu0 0
  %1821 = vmatmul.mubr.bf16.gmra.mrb[0].mxu0 %v1658
  %v1822 = vpop.f32.mrb[0].mxu0
  %v1823 = vadd.f32 %v1726, %v1822
  %v1824 = vpop.f32.mrb[0].mxu0
  %v1825 = vpop.f32.mrb[0].mxu0
  %v1826 = vadd.f32 %v1729, %v1825
  %v1827 = vpop.f32.mrb[0].mxu0
  %1828 = vmatprep.mubr.bf16.mxu0 0
  %1829 = vmatmul.mubr.bf16.gmra.mrb[0].mxu0 %v1661
  %v1830 = vpop.f32.mrb[0].mxu0
  %v1831 = vadd.f32 %v1734, %v1830
  %v1832 = vpop.f32.mrb[0].mxu0
  %v1833 = vpop.f32.mrb[0].mxu0
  %v1834 = vadd.f32 %v1737, %v1833
  %v1835 = vpop.f32.mrb[0].mxu0
  %1836 = vmatprep.mubr.bf16.mxu0 0
  %1837 = vmatmul.mubr.bf16.gmra.mrb[0].mxu0 %v1664
  %v1838 = vpop.f32.mrb[0].mxu0
  %v1839 = vadd.f32 %v1742, %v1838
  %v1840 = vpop.f32.mrb[0].mxu0
  %v1841 = vpop.f32.mrb[0].mxu0
  %v1842 = vadd.f32 %v1745, %v1841
  %v1843 = vpop.f32.mrb[0].mxu0
  %1844 = vmatprep.mubr.bf16.mxu0 0
  %1845 = vmatmul.mubr.bf16.gmra.mrb[0].mxu0 %v1667
  %v1846 = vpop.f32.mrb[0].mxu0
  %v1847 = vadd.f32 %v1750, %v1846
  %v1848 = vpop.f32.mrb[0].mxu0
  %v1849 = vpop.f32.mrb[0].mxu0
  %v1850 = vadd.f32 %v1753, %v1849
  %v1851 = vpop.f32.mrb[0].mxu0
  %1852 = vmatprep.mubr.bf16.mxu0 0
  %1853 = vmatmul.mubr.bf16.gmra.mrb[0].mxu0 %v1670
  %v1854 = vpop.f32.mrb[0].mxu0
  %v1855 = vadd.f32 %v1758, %v1854
  %v1856 = vpop.f32.mrb[0].mxu0
  %v1857 = vpop.f32.mrb[0].mxu0
  %v1858 = vadd.f32 %v1761, %v1857
  %v1859 = vpop.f32.mrb[0].mxu0
  %1860 = vmatprep.mubr.bf16.mxu0 0
  %1861 = vmatmul.mubr.bf16.gmra.mrb[0].mxu0 %v1673
  %v1862 = vpop.f32.mrb[0].mxu0
  %v1863 = vadd.f32 %v1766, %v1862
  %v1864 = vpop.f32.mrb[0].mxu0
  %v1865 = vpop.f32.mrb[0].mxu0
  %v1866 = vadd.f32 %v1769, %v1865
  %v1867 = vpop.f32.mrb[0].mxu0
  %1868 = vdwg.mxu0
  %v1869 = vpack.c.bf16 %v1810, %v1807
  %v1870 = vpack.c.bf16 %v1818, %v1815
  %v1871 = vpack.c.bf16 %v1826, %v1823
  %v1872 = vpack.c.bf16 %v1834, %v1831
  %v1873 = vpack.c.bf16 %v1842, %v1839
  %v1874 = vpack.c.bf16 %v1850, %v1847
  %v1875 = vpack.c.bf16 %v1858, %v1855
  %v1876 = vpack.c.bf16 %v1866, %v1863
  %v1885 = vunpack.c.l.b16 %v1869
  %v1886 = vunpack.c.h.b16 %v1869
  %v1887 = vunpack.c.l.b16 %v1870
  %v1888 = vunpack.c.h.b16 %v1870
  %v1889 = vunpack.c.l.b16 %v1871
  %v1890 = vunpack.c.h.b16 %v1871
  %v1891 = vunpack.c.l.b16 %v1872
  %v1892 = vunpack.c.h.b16 %v1872
  %v1893 = vunpack.c.l.b16 %v1873
  %v1894 = vunpack.c.h.b16 %v1873
  %v1895 = vunpack.c.l.b16 %v1874
  %v1896 = vunpack.c.h.b16 %v1874
  %v1897 = vunpack.c.l.b16 %v1875
  %v1898 = vunpack.c.h.b16 %v1875
  %v1899 = vunpack.c.l.b16 %v1876
  %v1900 = vunpack.c.h.b16 %v1876
  %v1901 = vpack.c.b16 %v1885, %v1885
  %v1902 = vpack.c.b16 %v1886, %v1886
  %v1903 = vpack.c.b16 %v1887, %v1887
  %v1904 = vpack.c.b16 %v1888, %v1888
  %v1905 = vpack.c.b16 %v1889, %v1889
  %v1906 = vpack.c.b16 %v1890, %v1890
  %v1907 = vpack.c.b16 %v1891, %v1891
  %v1908 = vpack.c.b16 %v1892, %v1892
  %v1909 = vpack.c.b16 %v1893, %v1893
  %v1910 = vpack.c.b16 %v1894, %v1894
  %v1911 = vpack.c.b16 %v1895, %v1895
  %v1912 = vpack.c.b16 %v1896, %v1896
  %v1913 = vpack.c.b16 %v1897, %v1897
  %v1914 = vpack.c.b16 %v1898, %v1898
  %v1915 = vpack.c.b16 %v1899, %v1899
  %v1916 = vpack.c.b16 %v1900, %v1900
  %1933 = vst [vmem:[%s3] sm:$0xf] %v1901
  %1934 = vst [vmem:[%s3 + $0x4] sm:$0xf] %v1902
  %1935 = vst [vmem:[%s3 + $0x8] sm:$0xf] %v1903
  %1936 = vst [vmem:[%s3 + $0xc] sm:$0xf] %v1904
  %1937 = vst [vmem:[%s3 + $0x10] sm:$0xf] %v1905
  %1938 = vst [vmem:[%s3 + $0x14] sm:$0xf] %v1906
  %1939 = vst [vmem:[%s3 + $0x18] sm:$0xf] %v1907
  %1940 = vst [vmem:[%s3 + $0x1c] sm:$0xf] %v1908
  %1941 = vst [vmem:[%s3 + $0x20] sm:$0xf] %v1909
  %1942 = vst [vmem:[%s3 + $0x24] sm:$0xf] %v1910
  %1943 = vst [vmem:[%s3 + $0x28] sm:$0xf] %v1911
  %1944 = vst [vmem:[%s3 + $0x2c] sm:$0xf] %v1912
  %1945 = vst [vmem:[%s3 + $0x30] sm:$0xf] %v1913
  %1946 = vst [vmem:[%s3 + $0x34] sm:$0xf] %v1914
  %1947 = vst [vmem:[%s3 + $0x38] sm:$0xf] %v1915
  %1948 = vst [vmem:[%s3 + $0x3c] sm:$0xf] %v1916
  // Predicated region
  $region14: #{upsample_forward.1} parent=0 // pred_check
    _
  $region15: #{upsample_forward.1} parent=0 // pred_check_branch
    %1950 = sbr.rel (0) target = $region17
  $region16: #{upsample_forward.1} parent=0 // pred_region
    _
  $region17: #{upsample_forward.1} parent=0 // pred_fallthru
    _
  // Predicated region
  $region18: #{upsample_forward.1} parent=0 // pred_check
    _
  $region19: #{upsample_forward.1} parent=0 // pred_check_branch
    %1952 = sbr.rel (0) target = $region21
  $region20: #{upsample_forward.1} parent=0 // pred_region
    _
  $region21: #{upsample_forward.1} parent=0 // pred_fallthru
    _

</llo_original>
